<compile_context>
chip_gen: v5e
topology: v5e:2x2
jax: 0.10.0
libtpu: 0.0.40
codegen_flags: <defaults>
</compile_context>

<pallas_src>
import jax
import jax.numpy as jnp
from jax.experimental import pallas as pl
from jax.experimental.pallas import tpu as pltpu

INPUT_SIZE = 20
HIDDEN_SIZE = 50
NUM_CLASSES = 9

LANE = 128      # per-gate padded hidden width / padded class width (lane alignment)
SUBLANE = 8     # padded batch rows (sublane alignment)
NEG_PAD = -1e30  # logit value for padded class lanes -> exp() underflows to exactly 0


def _round_up(n, m):
    return ((n + m - 1) // m) * m


def lstm_classifier_kernel(x2d_ref, wih_t_ref, whh_t_ref, b_ref, wfc_t_ref, bfc_ref,
                           out_ref, xg_ref):
    # x2d:   (T*Bp, D)    bf16, timestep-major, batch padded to Bp (multiple of 8)
    # wih_t: (D, 4*Hp)    bf16, gate g occupies lanes [g*Hp, g*Hp+H), rest zero
    # whh_t: (Hp, 4*Hp)   bf16, same column layout; rows >= H are zero
    # b:     (1, 4*Hp)    f32, b_ih + b_hh, gate-padded with zeros
    # wfc_t: (Hp, Cp)     bf16, rows >= H and cols >= C are zero
    # bfc:   (1, Cp)      f32, cols >= C are NEG_PAD (so padded classes get prob 0)
    # out:   (Bp, Cp)     f32, lane-dense padded probabilities
    # xg:    (T*Bp, 4*Hp) f32 VMEM scratch for the input->gate pre-matmul
    TBp, _ = x2d_ref.shape
    Hp = wih_t_ref.shape[1] // 4
    Bp = out_ref.shape[0]
    T = TBp // Bp

    # One MXU matmul for all timesteps' input contributions; park it in VMEM scratch so it
    # does not stay live in vregs across the unrolled recurrence.
    xg_ref[...] = jnp.dot(x2d_ref[...], wih_t_ref[...],
                          preferred_element_type=jnp.float32) + b_ref[...]

    whh_t = whh_t_ref[...]
    h = jnp.zeros((Bp, Hp), jnp.float32)
    c = jnp.zeros((Bp, Hp), jnp.float32)

    # T is small & static: unroll. Per-step xg read is a sublane-aligned static slice from
    # VMEM scratch; per-gate slices are lane-aligned (Hp = 128).
    for t in range(T):
        gates = xg_ref[t * Bp:(t + 1) * Bp, :] + jnp.dot(
            h.astype(jnp.bfloat16), whh_t, preferred_element_type=jnp.float32)
        i_g = jax.nn.sigmoid(gates[:, 0 * Hp:1 * Hp])
        f_g = jax.nn.sigmoid(gates[:, 1 * Hp:2 * Hp])
        g_g = jnp.tanh(gates[:, 2 * Hp:3 * Hp])
        o_g = jax.nn.sigmoid(gates[:, 3 * Hp:4 * Hp])
        c = f_g * c + i_g * g_g
        h = o_g * jnp.tanh(c)

    # fc(h_n) then softmax over the (lane-padded) class dim. Padded class lanes carry logit
    # NEG_PAD -> exp underflows to 0 -> they contribute nothing to the denominator.
    logits = jnp.dot(h.astype(jnp.bfloat16), wfc_t_ref[...],
                     preferred_element_type=jnp.float32) + bfc_ref[...]
    m = jnp.max(logits, axis=1, keepdims=True)
    e = jnp.exp(logits - m)
    denom = jnp.sum(e, axis=1, keepdims=True)
    out_ref[...] = (e / denom).astype(out_ref.dtype)   # exact division: rows sum to 1


def prepare_params(params):
    """One-time weight prep (hoisted out of the forward hot path).

    Transposes + gate-pads weights so every gate block starts at a lane multiple of 128,
    and casts the MXU operands to bf16. Biases stay f32 (added after the f32-accumulated dot).
    """
    w_ih, w_hh, b_ih, b_hh, w_fc, b_fc = params
    H4, D = w_ih.shape
    H = H4 // 4
    C = w_fc.shape[0]
    Hp = LANE
    Cp = LANE

    wih_t = jnp.zeros((D, 4 * Hp), jnp.float32)
    whh_t = jnp.zeros((Hp, 4 * Hp), jnp.float32)
    b = jnp.zeros((1, 4 * Hp), jnp.float32)
    b_sum = (b_ih + b_hh).astype(jnp.float32)
    for g in range(4):  # PyTorch gate order: i, f, g, o
        wih_t = wih_t.at[:, g * Hp:g * Hp + H].set(w_ih[g * H:(g + 1) * H, :].T)
        whh_t = whh_t.at[:H, g * Hp:g * Hp + H].set(w_hh[g * H:(g + 1) * H, :].T)
        b = b.at[0, g * Hp:g * Hp + H].set(b_sum[g * H:(g + 1) * H])

    wfc_t = jnp.zeros((Hp, Cp), jnp.float32).at[:H, :C].set(w_fc.T)
    bfc = jnp.full((1, Cp), NEG_PAD, jnp.float32).at[0, :C].set(b_fc.astype(jnp.float32))

    return (wih_t.astype(jnp.bfloat16),
            whh_t.astype(jnp.bfloat16),
            b,
            wfc_t.astype(jnp.bfloat16),
            bfc)


def lstm_classifier(x, prepped):
    """x: (B, T, input_size) f32; prepped: output of prepare_params (reused across calls).

    Returns softmax probabilities (B, NUM_CLASSES).
    """
    wih_t, whh_t, b, wfc_t, bfc = prepped
    B, T, D = x.shape
    Bp = _round_up(B, SUBLANE)
    Cp = wfc_t.shape[1]
    H4p = whh_t.shape[1]

    # (B, T, D) -> (T, Bp, D) -> (T*Bp, D): each timestep block starts at a sublane multiple
    # of 8. Small (a few KiB); fused into the same jitted program as the pallas_call.
    x_t = jnp.transpose(x, (1, 0, 2)).astype(jnp.bfloat16)
    x_t = jnp.pad(x_t, ((0, 0), (0, Bp - B), (0, 0)))
    x2d = x_t.reshape(T * Bp, D)

    vmem = pl.BlockSpec(memory_space=pltpu.MemorySpace.VMEM)
    probs_padded = pl.pallas_call(
        lstm_classifier_kernel,
        out_shape=jax.ShapeDtypeStruct((Bp, Cp), jnp.float32),
        in_specs=[vmem] * 6,
        out_specs=vmem,
        scratch_shapes=[pltpu.VMEM((T * Bp, H4p), jnp.float32)],
    )(x2d, wih_t, whh_t, b, wfc_t, bfc)

    return probs_padded[:B, :NUM_CLASSES]


def init_params(key, input_size, hidden_size, num_classes):
    """PyTorch-style uniform(-1/sqrt(H), 1/sqrt(H)) init for LSTM and fc (deterministic)."""
    ks = jax.random.split(key, 6)
    k_lstm = 1.0 / jnp.sqrt(hidden_size)
    k_fc = 1.0 / jnp.sqrt(hidden_size)
    w_ih = jax.random.uniform(ks[0], (4 * hidden_size, input_size), jnp.float32, -k_lstm, k_lstm)
    w_hh = jax.random.uniform(ks[1], (4 * hidden_size, hidden_size), jnp.float32, -k_lstm, k_lstm)
    b_ih = jax.random.uniform(ks[2], (4 * hidden_size,), jnp.float32, -k_lstm, k_lstm)
    b_hh = jax.random.uniform(ks[3], (4 * hidden_size,), jnp.float32, -k_lstm, k_lstm)
    w_fc = jax.random.uniform(ks[4], (num_classes, hidden_size), jnp.float32, -k_fc, k_fc)
    b_fc = jax.random.uniform(ks[5], (num_classes,), jnp.float32, -k_fc, k_fc)
    return (w_ih, w_hh, b_ih, b_hh, w_fc, b_fc)


def reference_forward(x, params):
    """Pure-JAX f32 reference mirroring the PyTorch module semantics."""
    w_ih, w_hh, b_ih, b_hh, w_fc, b_fc = params
    B = x.shape[0]
    H = w_hh.shape[1]
    h = jnp.zeros((B, H), jnp.float32)
    c = jnp.zeros((B, H), jnp.float32)
    for t in range(x.shape[1]):
        gates = x[:, t, :] @ w_ih.T + h @ w_hh.T + b_ih + b_hh
        i_g, f_g, g_g, o_g = jnp.split(gates, 4, axis=1)
        c = jax.nn.sigmoid(f_g) * c + jax.nn.sigmoid(i_g) * jnp.tanh(g_g)
        h = jax.nn.sigmoid(o_g) * jnp.tanh(c)
    logits = h @ w_fc.T + b_fc
    return jax.nn.softmax(logits, axis=1)


if __name__ == "__main__":
    batch, seq = 2, 8
    key = jax.random.PRNGKey(0)
    k_x, k_p = jax.random.split(key)
    x = jax.random.normal(k_x, (batch, seq, INPUT_SIZE), jnp.float32)
    params = init_params(k_p, INPUT_SIZE, HIDDEN_SIZE, NUM_CLASSES)

    # Weight prep is done once, outside the per-call hot path, and reused.
    prepped = prepare_params(params)

    fwd = jax.jit(lstm_classifier)
    out = jax.block_until_ready(fwd(x, prepped))

    ref = reference_forward(x, params)
    assert out.shape == (batch, NUM_CLASSES)
    # Exact division in the kernel -> rows sum to 1 to f32 precision.
    assert jnp.allclose(jnp.sum(out, axis=1), 1.0, atol=1e-5), "softmax rows must sum to 1"
    # Tolerance accounts for bf16 MXU operands (f32 accumulation) through the 8-step
    # recurrence vs. the pure-f32 reference; observed error is ~1e-3 on the probabilities.
    assert jnp.allclose(out, ref, atol=1e-2, rtol=1e-2), "mismatch vs reference"

    print("KERNEL_OK")
</pallas_src>

<mosaic_0001>
module attributes {stable_mosaic.version = 11 : i64} {
  func.func @lstm_classifier_kernel(%arg0: memref<64x20xbf16, #tpu.memory_space<vmem>>, %arg1: memref<20x512xbf16, #tpu.memory_space<vmem>>, %arg2: memref<128x512xbf16, #tpu.memory_space<vmem>>, %arg3: memref<1x512xf32, #tpu.memory_space<vmem>>, %arg4: memref<128x128xbf16, #tpu.memory_space<vmem>>, %arg5: memref<1x128xf32, #tpu.memory_space<vmem>>, %arg6: memref<8x128xf32, #tpu.memory_space<vmem>>, %arg7: memref<64x512xf32, #tpu.memory_space<vmem>>) attributes {dimension_semantics = [], scalar_prefetch = 0 : i64, scratch_operands = 1 : i64, tpu.core_type = #tpu.core_type<tc>} {
    %c0 = arith.constant 0 : index
    %c0_0 = arith.constant 0 : index
    %0 = vector.load %arg0[%c0, %c0_0] : memref<64x20xbf16, #tpu.memory_space<vmem>>, vector<64x20xbf16>
    %c0_1 = arith.constant 0 : index
    %c0_2 = arith.constant 0 : index
    %1 = vector.load %arg1[%c0_1, %c0_2] : memref<20x512xbf16, #tpu.memory_space<vmem>>, vector<20x512xbf16>
    %cst = arith.constant dense<0.000000e+00> : vector<64x512xf32>
    %2 = tpu.matmul %0, %1, %cst {dimension_numbers = #tpu.dot_dimension_numbers<[1], [0], [0], [1], [0, 0, 1, 1], [], []>} : vector<64x20xbf16>, vector<20x512xbf16>, vector<64x512xf32> -> vector<64x512xf32>
    %c0_3 = arith.constant 0 : index
    %c0_4 = arith.constant 0 : index
    %3 = vector.load %arg3[%c0_3, %c0_4] : memref<1x512xf32, #tpu.memory_space<vmem>>, vector<1x512xf32>
    %4 = vector.broadcast %3 : vector<1x512xf32> to vector<64x512xf32>
    %5 = arith.addf %2, %4 : vector<64x512xf32>
    %c0_5 = arith.constant 0 : index
    %c0_6 = arith.constant 0 : index
    %6 = vector.load %arg7[%c0_5, %c0_6] : memref<64x512xf32, #tpu.memory_space<vmem>>, vector<64x512xf32>
    tpu.vector_store %arg7[%c0_5, %c0_6], %5 {strides = array<i32>} : memref<64x512xf32, #tpu.memory_space<vmem>>, vector<64x512xf32>,
    %c0_7 = arith.constant 0 : index
    %c0_8 = arith.constant 0 : index
    %7 = vector.load %arg2[%c0_7, %c0_8] : memref<128x512xbf16, #tpu.memory_space<vmem>>, vector<128x512xbf16>
    %cst_9 = arith.constant 0.000000e+00 : f32
    %8 = vector.broadcast %cst_9 : f32 to vector<8x128xf32>
    %cst_10 = arith.constant 0.000000e+00 : f32
    %9 = vector.broadcast %cst_10 : f32 to vector<8x128xf32>
    %c0_11 = arith.constant 0 : index
    %c0_12 = arith.constant 0 : index
    %10 = vector.load %arg7[%c0_11, %c0_12] : memref<64x512xf32, #tpu.memory_space<vmem>>, vector<8x512xf32>
    %11 = arith.truncf %8 : vector<8x128xf32> to vector<8x128xbf16>
    %cst_13 = arith.constant dense<0.000000e+00> : vector<8x512xf32>
    %12 = tpu.matmul %11, %7, %cst_13 {dimension_numbers = #tpu.dot_dimension_numbers<[1], [0], [0], [1], [0, 0, 1, 1], [], []>} : vector<8x128xbf16>, vector<128x512xbf16>, vector<8x512xf32> -> vector<8x512xf32>
    %13 = arith.addf %10, %12 : vector<8x512xf32>
    %14 = vector.extract_strided_slice %13 {offsets = [0, 0], sizes = [8, 128], strides = [1, 1]} : vector<8x512xf32> to vector<8x128xf32>
    %15 = arith.negf %14 : vector<8x128xf32>
    %16 = math.exp %15 : vector<8x128xf32>
    %cst_14 = arith.constant 1.000000e+00 : f32
    %17 = vector.broadcast %cst_14 : f32 to vector<8x128xf32>
    %18 = arith.addf %17, %16 : vector<8x128xf32>
    %19 = arith.divf %17, %18 : vector<8x128xf32>
    %20 = vector.extract_strided_slice %13 {offsets = [0, 128], sizes = [8, 128], strides = [1, 1]} : vector<8x512xf32> to vector<8x128xf32>
    %21 = arith.negf %20 : vector<8x128xf32>
    %22 = math.exp %21 : vector<8x128xf32>
    %cst_15 = arith.constant 1.000000e+00 : f32
    %23 = vector.broadcast %cst_15 : f32 to vector<8x128xf32>
    %24 = arith.addf %23, %22 : vector<8x128xf32>
    %25 = arith.divf %23, %24 : vector<8x128xf32>
    %26 = vector.extract_strided_slice %13 {offsets = [0, 256], sizes = [8, 128], strides = [1, 1]} : vector<8x512xf32> to vector<8x128xf32>
    %27 = math.tanh %26 : vector<8x128xf32>
    %28 = vector.extract_strided_slice %13 {offsets = [0, 384], sizes = [8, 128], strides = [1, 1]} : vector<8x512xf32> to vector<8x128xf32>
    %29 = arith.negf %28 : vector<8x128xf32>
    %30 = math.exp %29 : vector<8x128xf32>
    %cst_16 = arith.constant 1.000000e+00 : f32
    %31 = vector.broadcast %cst_16 : f32 to vector<8x128xf32>
    %32 = arith.addf %31, %30 : vector<8x128xf32>
    %33 = arith.divf %31, %32 : vector<8x128xf32>
    %34 = arith.mulf %25, %9 : vector<8x128xf32>
    %35 = arith.mulf %19, %27 : vector<8x128xf32>
    %36 = arith.addf %34, %35 : vector<8x128xf32>
    %37 = math.tanh %36 : vector<8x128xf32>
    %38 = arith.mulf %33, %37 : vector<8x128xf32>
    %c8 = arith.constant 8 : index
    %c0_17 = arith.constant 0 : index
    %39 = vector.load %arg7[%c8, %c0_17] : memref<64x512xf32, #tpu.memory_space<vmem>>, vector<8x512xf32>
    %40 = arith.truncf %38 : vector<8x128xf32> to vector<8x128xbf16>
    %cst_18 = arith.constant dense<0.000000e+00> : vector<8x512xf32>
    %41 = tpu.matmul %40, %7, %cst_18 {dimension_numbers = #tpu.dot_dimension_numbers<[1], [0], [0], [1], [0, 0, 1, 1], [], []>} : vector<8x128xbf16>, vector<128x512xbf16>, vector<8x512xf32> -> vector<8x512xf32>
    %42 = arith.addf %39, %41 : vector<8x512xf32>
    %43 = vector.extract_strided_slice %42 {offsets = [0, 0], sizes = [8, 128], strides = [1, 1]} : vector<8x512xf32> to vector<8x128xf32>
    %44 = arith.negf %43 : vector<8x128xf32>
    %45 = math.exp %44 : vector<8x128xf32>
    %cst_19 = arith.constant 1.000000e+00 : f32
    %46 = vector.broadcast %cst_19 : f32 to vector<8x128xf32>
    %47 = arith.addf %46, %45 : vector<8x128xf32>
    %48 = arith.divf %46, %47 : vector<8x128xf32>
    %49 = vector.extract_strided_slice %42 {offsets = [0, 128], sizes = [8, 128], strides = [1, 1]} : vector<8x512xf32> to vector<8x128xf32>
    %50 = arith.negf %49 : vector<8x128xf32>
    %51 = math.exp %50 : vector<8x128xf32>
    %cst_20 = arith.constant 1.000000e+00 : f32
    %52 = vector.broadcast %cst_20 : f32 to vector<8x128xf32>
    %53 = arith.addf %52, %51 : vector<8x128xf32>
    %54 = arith.divf %52, %53 : vector<8x128xf32>
    %55 = vector.extract_strided_slice %42 {offsets = [0, 256], sizes = [8, 128], strides = [1, 1]} : vector<8x512xf32> to vector<8x128xf32>
    %56 = math.tanh %55 : vector<8x128xf32>
    %57 = vector.extract_strided_slice %42 {offsets = [0, 384], sizes = [8, 128], strides = [1, 1]} : vector<8x512xf32> to vector<8x128xf32>
    %58 = arith.negf %57 : vector<8x128xf32>
    %59 = math.exp %58 : vector<8x128xf32>
    %cst_21 = arith.constant 1.000000e+00 : f32
    %60 = vector.broadcast %cst_21 : f32 to vector<8x128xf32>
    %61 = arith.addf %60, %59 : vector<8x128xf32>
    %62 = arith.divf %60, %61 : vector<8x128xf32>
    %63 = arith.mulf %54, %36 : vector<8x128xf32>
    %64 = arith.mulf %48, %56 : vector<8x128xf32>
    %65 = arith.addf %63, %64 : vector<8x128xf32>
    %66 = math.tanh %65 : vector<8x128xf32>
    %67 = arith.mulf %62, %66 : vector<8x128xf32>
    %c16 = arith.constant 16 : index
    %c0_22 = arith.constant 0 : index
    %68 = vector.load %arg7[%c16, %c0_22] : memref<64x512xf32, #tpu.memory_space<vmem>>, vector<8x512xf32>
    %69 = arith.truncf %67 : vector<8x128xf32> to vector<8x128xbf16>
    %cst_23 = arith.constant dense<0.000000e+00> : vector<8x512xf32>
    %70 = tpu.matmul %69, %7, %cst_23 {dimension_numbers = #tpu.dot_dimension_numbers<[1], [0], [0], [1], [0, 0, 1, 1], [], []>} : vector<8x128xbf16>, vector<128x512xbf16>, vector<8x512xf32> -> vector<8x512xf32>
    %71 = arith.addf %68, %70 : vector<8x512xf32>
    %72 = vector.extract_strided_slice %71 {offsets = [0, 0], sizes = [8, 128], strides = [1, 1]} : vector<8x512xf32> to vector<8x128xf32>
    %73 = arith.negf %72 : vector<8x128xf32>
    %74 = math.exp %73 : vector<8x128xf32>
    %cst_24 = arith.constant 1.000000e+00 : f32
    %75 = vector.broadcast %cst_24 : f32 to vector<8x128xf32>
    %76 = arith.addf %75, %74 : vector<8x128xf32>
    %77 = arith.divf %75, %76 : vector<8x128xf32>
    %78 = vector.extract_strided_slice %71 {offsets = [0, 128], sizes = [8, 128], strides = [1, 1]} : vector<8x512xf32> to vector<8x128xf32>
    %79 = arith.negf %78 : vector<8x128xf32>
    %80 = math.exp %79 : vector<8x128xf32>
    %cst_25 = arith.constant 1.000000e+00 : f32
    %81 = vector.broadcast %cst_25 : f32 to vector<8x128xf32>
    %82 = arith.addf %81, %80 : vector<8x128xf32>
    %83 = arith.divf %81, %82 : vector<8x128xf32>
    %84 = vector.extract_strided_slice %71 {offsets = [0, 256], sizes = [8, 128], strides = [1, 1]} : vector<8x512xf32> to vector<8x128xf32>
    %85 = math.tanh %84 : vector<8x128xf32>
    %86 = vector.extract_strided_slice %71 {offsets = [0, 384], sizes = [8, 128], strides = [1, 1]} : vector<8x512xf32> to vector<8x128xf32>
    %87 = arith.negf %86 : vector<8x128xf32>
    %88 = math.exp %87 : vector<8x128xf32>
    %cst_26 = arith.constant 1.000000e+00 : f32
    %89 = vector.broadcast %cst_26 : f32 to vector<8x128xf32>
    %90 = arith.addf %89, %88 : vector<8x128xf32>
    %91 = arith.divf %89, %90 : vector<8x128xf32>
    %92 = arith.mulf %83, %65 : vector<8x128xf32>
    %93 = arith.mulf %77, %85 : vector<8x128xf32>
    %94 = arith.addf %92, %93 : vector<8x128xf32>
    %95 = math.tanh %94 : vector<8x128xf32>
    %96 = arith.mulf %91, %95 : vector<8x128xf32>
    %c24 = arith.constant 24 : index
    %c0_27 = arith.constant 0 : index
    %97 = vector.load %arg7[%c24, %c0_27] : memref<64x512xf32, #tpu.memory_space<vmem>>, vector<8x512xf32>
    %98 = arith.truncf %96 : vector<8x128xf32> to vector<8x128xbf16>
    %cst_28 = arith.constant dense<0.000000e+00> : vector<8x512xf32>
    %99 = tpu.matmul %98, %7, %cst_28 {dimension_numbers = #tpu.dot_dimension_numbers<[1], [0], [0], [1], [0, 0, 1, 1], [], []>} : vector<8x128xbf16>, vector<128x512xbf16>, vector<8x512xf32> -> vector<8x512xf32>
    %100 = arith.addf %97, %99 : vector<8x512xf32>
    %101 = vector.extract_strided_slice %100 {offsets = [0, 0], sizes = [8, 128], strides = [1, 1]} : vector<8x512xf32> to vector<8x128xf32>
    %102 = arith.negf %101 : vector<8x128xf32>
    %103 = math.exp %102 : vector<8x128xf32>
    %cst_29 = arith.constant 1.000000e+00 : f32
    %104 = vector.broadcast %cst_29 : f32 to vector<8x128xf32>
    %105 = arith.addf %104, %103 : vector<8x128xf32>
    %106 = arith.divf %104, %105 : vector<8x128xf32>
    %107 = vector.extract_strided_slice %100 {offsets = [0, 128], sizes = [8, 128], strides = [1, 1]} : vector<8x512xf32> to vector<8x128xf32>
    %108 = arith.negf %107 : vector<8x128xf32>
    %109 = math.exp %108 : vector<8x128xf32>
    %cst_30 = arith.constant 1.000000e+00 : f32
    %110 = vector.broadcast %cst_30 : f32 to vector<8x128xf32>
    %111 = arith.addf %110, %109 : vector<8x128xf32>
    %112 = arith.divf %110, %111 : vector<8x128xf32>
    %113 = vector.extract_strided_slice %100 {offsets = [0, 256], sizes = [8, 128], strides = [1, 1]} : vector<8x512xf32> to vector<8x128xf32>
    %114 = math.tanh %113 : vector<8x128xf32>
    %115 = vector.extract_strided_slice %100 {offsets = [0, 384], sizes = [8, 128], strides = [1, 1]} : vector<8x512xf32> to vector<8x128xf32>
    %116 = arith.negf %115 : vector<8x128xf32>
    %117 = math.exp %116 : vector<8x128xf32>
    %cst_31 = arith.constant 1.000000e+00 : f32
    %118 = vector.broadcast %cst_31 : f32 to vector<8x128xf32>
    %119 = arith.addf %118, %117 : vector<8x128xf32>
    %120 = arith.divf %118, %119 : vector<8x128xf32>
    %121 = arith.mulf %112, %94 : vector<8x128xf32>
    %122 = arith.mulf %106, %114 : vector<8x128xf32>
    %123 = arith.addf %121, %122 : vector<8x128xf32>
    %124 = math.tanh %123 : vector<8x128xf32>
    %125 = arith.mulf %120, %124 : vector<8x128xf32>
    %c32 = arith.constant 32 : index
    %c0_32 = arith.constant 0 : index
    %126 = vector.load %arg7[%c32, %c0_32] : memref<64x512xf32, #tpu.memory_space<vmem>>, vector<8x512xf32>
    %127 = arith.truncf %125 : vector<8x128xf32> to vector<8x128xbf16>
    %cst_33 = arith.constant dense<0.000000e+00> : vector<8x512xf32>
    %128 = tpu.matmul %127, %7, %cst_33 {dimension_numbers = #tpu.dot_dimension_numbers<[1], [0], [0], [1], [0, 0, 1, 1], [], []>} : vector<8x128xbf16>, vector<128x512xbf16>, vector<8x512xf32> -> vector<8x512xf32>
    %129 = arith.addf %126, %128 : vector<8x512xf32>
    %130 = vector.extract_strided_slice %129 {offsets = [0, 0], sizes = [8, 128], strides = [1, 1]} : vector<8x512xf32> to vector<8x128xf32>
    %131 = arith.negf %130 : vector<8x128xf32>
    %132 = math.exp %131 : vector<8x128xf32>
    %cst_34 = arith.constant 1.000000e+00 : f32
    %133 = vector.broadcast %cst_34 : f32 to vector<8x128xf32>
    %134 = arith.addf %133, %132 : vector<8x128xf32>
    %135 = arith.divf %133, %134 : vector<8x128xf32>
    %136 = vector.extract_strided_slice %129 {offsets = [0, 128], sizes = [8, 128], strides = [1, 1]} : vector<8x512xf32> to vector<8x128xf32>
    %137 = arith.negf %136 : vector<8x128xf32>
    %138 = math.exp %137 : vector<8x128xf32>
    %cst_35 = arith.constant 1.000000e+00 : f32
    %139 = vector.broadcast %cst_35 : f32 to vector<8x128xf32>
    %140 = arith.addf %139, %138 : vector<8x128xf32>
    %141 = arith.divf %139, %140 : vector<8x128xf32>
    %142 = vector.extract_strided_slice %129 {offsets = [0, 256], sizes = [8, 128], strides = [1, 1]} : vector<8x512xf32> to vector<8x128xf32>
    %143 = math.tanh %142 : vector<8x128xf32>
    %144 = vector.extract_strided_slice %129 {offsets = [0, 384], sizes = [8, 128], strides = [1, 1]} : vector<8x512xf32> to vector<8x128xf32>
    %145 = arith.negf %144 : vector<8x128xf32>
    %146 = math.exp %145 : vector<8x128xf32>
    %cst_36 = arith.constant 1.000000e+00 : f32
    %147 = vector.broadcast %cst_36 : f32 to vector<8x128xf32>
    %148 = arith.addf %147, %146 : vector<8x128xf32>
    %149 = arith.divf %147, %148 : vector<8x128xf32>
    %150 = arith.mulf %141, %123 : vector<8x128xf32>
    %151 = arith.mulf %135, %143 : vector<8x128xf32>
    %152 = arith.addf %150, %151 : vector<8x128xf32>
    %153 = math.tanh %152 : vector<8x128xf32>
    %154 = arith.mulf %149, %153 : vector<8x128xf32>
    %c40 = arith.constant 40 : index
    %c0_37 = arith.constant 0 : index
    %155 = vector.load %arg7[%c40, %c0_37] : memref<64x512xf32, #tpu.memory_space<vmem>>, vector<8x512xf32>
    %156 = arith.truncf %154 : vector<8x128xf32> to vector<8x128xbf16>
    %cst_38 = arith.constant dense<0.000000e+00> : vector<8x512xf32>
    %157 = tpu.matmul %156, %7, %cst_38 {dimension_numbers = #tpu.dot_dimension_numbers<[1], [0], [0], [1], [0, 0, 1, 1], [], []>} : vector<8x128xbf16>, vector<128x512xbf16>, vector<8x512xf32> -> vector<8x512xf32>
    %158 = arith.addf %155, %157 : vector<8x512xf32>
    %159 = vector.extract_strided_slice %158 {offsets = [0, 0], sizes = [8, 128], strides = [1, 1]} : vector<8x512xf32> to vector<8x128xf32>
    %160 = arith.negf %159 : vector<8x128xf32>
    %161 = math.exp %160 : vector<8x128xf32>
    %cst_39 = arith.constant 1.000000e+00 : f32
    %162 = vector.broadcast %cst_39 : f32 to vector<8x128xf32>
    %163 = arith.addf %162, %161 : vector<8x128xf32>
    %164 = arith.divf %162, %163 : vector<8x128xf32>
    %165 = vector.extract_strided_slice %158 {offsets = [0, 128], sizes = [8, 128], strides = [1, 1]} : vector<8x512xf32> to vector<8x128xf32>
    %166 = arith.negf %165 : vector<8x128xf32>
    %167 = math.exp %166 : vector<8x128xf32>
    %cst_40 = arith.constant 1.000000e+00 : f32
    %168 = vector.broadcast %cst_40 : f32 to vector<8x128xf32>
    %169 = arith.addf %168, %167 : vector<8x128xf32>
    %170 = arith.divf %168, %169 : vector<8x128xf32>
    %171 = vector.extract_strided_slice %158 {offsets = [0, 256], sizes = [8, 128], strides = [1, 1]} : vector<8x512xf32> to vector<8x128xf32>
    %172 = math.tanh %171 : vector<8x128xf32>
    %173 = vector.extract_strided_slice %158 {offsets = [0, 384], sizes = [8, 128], strides = [1, 1]} : vector<8x512xf32> to vector<8x128xf32>
    %174 = arith.negf %173 : vector<8x128xf32>
    %175 = math.exp %174 : vector<8x128xf32>
    %cst_41 = arith.constant 1.000000e+00 : f32
    %176 = vector.broadcast %cst_41 : f32 to vector<8x128xf32>
    %177 = arith.addf %176, %175 : vector<8x128xf32>
    %178 = arith.divf %176, %177 : vector<8x128xf32>
    %179 = arith.mulf %170, %152 : vector<8x128xf32>
    %180 = arith.mulf %164, %172 : vector<8x128xf32>
    %181 = arith.addf %179, %180 : vector<8x128xf32>
    %182 = math.tanh %181 : vector<8x128xf32>
    %183 = arith.mulf %178, %182 : vector<8x128xf32>
    %c48 = arith.constant 48 : index
    %c0_42 = arith.constant 0 : index
    %184 = vector.load %arg7[%c48, %c0_42] : memref<64x512xf32, #tpu.memory_space<vmem>>, vector<8x512xf32>
    %185 = arith.truncf %183 : vector<8x128xf32> to vector<8x128xbf16>
    %cst_43 = arith.constant dense<0.000000e+00> : vector<8x512xf32>
    %186 = tpu.matmul %185, %7, %cst_43 {dimension_numbers = #tpu.dot_dimension_numbers<[1], [0], [0], [1], [0, 0, 1, 1], [], []>} : vector<8x128xbf16>, vector<128x512xbf16>, vector<8x512xf32> -> vector<8x512xf32>
    %187 = arith.addf %184, %186 : vector<8x512xf32>
    %188 = vector.extract_strided_slice %187 {offsets = [0, 0], sizes = [8, 128], strides = [1, 1]} : vector<8x512xf32> to vector<8x128xf32>
    %189 = arith.negf %188 : vector<8x128xf32>
    %190 = math.exp %189 : vector<8x128xf32>
    %cst_44 = arith.constant 1.000000e+00 : f32
    %191 = vector.broadcast %cst_44 : f32 to vector<8x128xf32>
    %192 = arith.addf %191, %190 : vector<8x128xf32>
    %193 = arith.divf %191, %192 : vector<8x128xf32>
    %194 = vector.extract_strided_slice %187 {offsets = [0, 128], sizes = [8, 128], strides = [1, 1]} : vector<8x512xf32> to vector<8x128xf32>
    %195 = arith.negf %194 : vector<8x128xf32>
    %196 = math.exp %195 : vector<8x128xf32>
    %cst_45 = arith.constant 1.000000e+00 : f32
    %197 = vector.broadcast %cst_45 : f32 to vector<8x128xf32>
    %198 = arith.addf %197, %196 : vector<8x128xf32>
    %199 = arith.divf %197, %198 : vector<8x128xf32>
    %200 = vector.extract_strided_slice %187 {offsets = [0, 256], sizes = [8, 128], strides = [1, 1]} : vector<8x512xf32> to vector<8x128xf32>
    %201 = math.tanh %200 : vector<8x128xf32>
    %202 = vector.extract_strided_slice %187 {offsets = [0, 384], sizes = [8, 128], strides = [1, 1]} : vector<8x512xf32> to vector<8x128xf32>
    %203 = arith.negf %202 : vector<8x128xf32>
    %204 = math.exp %203 : vector<8x128xf32>
    %cst_46 = arith.constant 1.000000e+00 : f32
    %205 = vector.broadcast %cst_46 : f32 to vector<8x128xf32>
    %206 = arith.addf %205, %204 : vector<8x128xf32>
    %207 = arith.divf %205, %206 : vector<8x128xf32>
    %208 = arith.mulf %199, %181 : vector<8x128xf32>
    %209 = arith.mulf %193, %201 : vector<8x128xf32>
    %210 = arith.addf %208, %209 : vector<8x128xf32>
    %211 = math.tanh %210 : vector<8x128xf32>
    %212 = arith.mulf %207, %211 : vector<8x128xf32>
    %c56 = arith.constant 56 : index
    %c0_47 = arith.constant 0 : index
    %213 = vector.load %arg7[%c56, %c0_47] : memref<64x512xf32, #tpu.memory_space<vmem>>, vector<8x512xf32>
    %214 = arith.truncf %212 : vector<8x128xf32> to vector<8x128xbf16>
    %cst_48 = arith.constant dense<0.000000e+00> : vector<8x512xf32>
    %215 = tpu.matmul %214, %7, %cst_48 {dimension_numbers = #tpu.dot_dimension_numbers<[1], [0], [0], [1], [0, 0, 1, 1], [], []>} : vector<8x128xbf16>, vector<128x512xbf16>, vector<8x512xf32> -> vector<8x512xf32>
    %216 = arith.addf %213, %215 : vector<8x512xf32>
    %217 = vector.extract_strided_slice %216 {offsets = [0, 0], sizes = [8, 128], strides = [1, 1]} : vector<8x512xf32> to vector<8x128xf32>
    %218 = arith.negf %217 : vector<8x128xf32>
    %219 = math.exp %218 : vector<8x128xf32>
    %cst_49 = arith.constant 1.000000e+00 : f32
    %220 = vector.broadcast %cst_49 : f32 to vector<8x128xf32>
    %221 = arith.addf %220, %219 : vector<8x128xf32>
    %222 = arith.divf %220, %221 : vector<8x128xf32>
    %223 = vector.extract_strided_slice %216 {offsets = [0, 128], sizes = [8, 128], strides = [1, 1]} : vector<8x512xf32> to vector<8x128xf32>
    %224 = arith.negf %223 : vector<8x128xf32>
    %225 = math.exp %224 : vector<8x128xf32>
    %cst_50 = arith.constant 1.000000e+00 : f32
    %226 = vector.broadcast %cst_50 : f32 to vector<8x128xf32>
    %227 = arith.addf %226, %225 : vector<8x128xf32>
    %228 = arith.divf %226, %227 : vector<8x128xf32>
    %229 = vector.extract_strided_slice %216 {offsets = [0, 256], sizes = [8, 128], strides = [1, 1]} : vector<8x512xf32> to vector<8x128xf32>
    %230 = math.tanh %229 : vector<8x128xf32>
    %231 = vector.extract_strided_slice %216 {offsets = [0, 384], sizes = [8, 128], strides = [1, 1]} : vector<8x512xf32> to vector<8x128xf32>
    %232 = arith.negf %231 : vector<8x128xf32>
    %233 = math.exp %232 : vector<8x128xf32>
    %cst_51 = arith.constant 1.000000e+00 : f32
    %234 = vector.broadcast %cst_51 : f32 to vector<8x128xf32>
    %235 = arith.addf %234, %233 : vector<8x128xf32>
    %236 = arith.divf %234, %235 : vector<8x128xf32>
    %237 = arith.mulf %228, %210 : vector<8x128xf32>
    %238 = arith.mulf %222, %230 : vector<8x128xf32>
    %239 = arith.addf %237, %238 : vector<8x128xf32>
    %240 = math.tanh %239 : vector<8x128xf32>
    %241 = arith.mulf %236, %240 : vector<8x128xf32>
    %242 = arith.truncf %241 : vector<8x128xf32> to vector<8x128xbf16>
    %c0_52 = arith.constant 0 : index
    %c0_53 = arith.constant 0 : index
    %243 = vector.load %arg4[%c0_52, %c0_53] : memref<128x128xbf16, #tpu.memory_space<vmem>>, vector<128x128xbf16>
    %cst_54 = arith.constant dense<0.000000e+00> : vector<8x128xf32>
    %244 = tpu.matmul %242, %243, %cst_54 {dimension_numbers = #tpu.dot_dimension_numbers<[1], [0], [0], [1], [0, 0, 1, 1], [], []>} : vector<8x128xbf16>, vector<128x128xbf16>, vector<8x128xf32> -> vector<8x128xf32>
    %c0_55 = arith.constant 0 : index
    %c0_56 = arith.constant 0 : index
    %245 = vector.load %arg5[%c0_55, %c0_56] : memref<1x128xf32, #tpu.memory_space<vmem>>, vector<1x128xf32>
    %246 = vector.broadcast %245 : vector<1x128xf32> to vector<8x128xf32>
    %247 = arith.addf %244, %246 : vector<8x128xf32>
    %cst_57 = arith.constant dense<0xFF800000> : vector<8xf32>
    %248 = vector.multi_reduction <maximumf>, %247, %cst_57 [1] : vector<8x128xf32> to vector<8xf32>
    %249 = vector.shape_cast %248 : vector<8xf32> to vector<8x1xf32>
    %250 = vector.broadcast %249 : vector<8x1xf32> to vector<8x128xf32>
    %251 = arith.subf %247, %250 : vector<8x128xf32>
    %252 = math.exp %251 : vector<8x128xf32>
    %cst_58 = arith.constant dense<0.000000e+00> : vector<8xf32>
    %253 = vector.multi_reduction <add>, %252, %cst_58 [1] : vector<8x128xf32> to vector<8xf32>
    %254 = vector.shape_cast %253 : vector<8xf32> to vector<8x1xf32>
    %255 = vector.broadcast %254 : vector<8x1xf32> to vector<8x128xf32>
    %256 = arith.divf %252, %255 : vector<8x128xf32>
    %c0_59 = arith.constant 0 : index
    %c0_60 = arith.constant 0 : index
    %257 = vector.load %arg6[%c0_59, %c0_60] : memref<8x128xf32, #tpu.memory_space<vmem>>, vector<8x128xf32>
    tpu.vector_store %arg6[%c0_59, %c0_60], %256 {strides = array<i32>} : memref<8x128xf32, #tpu.memory_space<vmem>>, vector<8x128xf32>,
    return
  }
}

</mosaic_0001>

<llo_original>
// kernel: lstm_classifier.1
$region0: #{lstm_classifier.1}
  #allocation0 [shape = 'u32[]', space=smem, size = 0x4, offset = 0x4, fixed_abs, tag = 'smem constant byte address 0x4 - core index']
  #allocation1 [shape = 'u32[72,128]{1,0:T(1,128)}', space=vmem, size = 0x9000, scoped, tag = 'internal scratch']
  #allocation2 [shape = 'f32[64,512]{1,0:T(8,128)}', space=vmem, size = 0x20000, scoped, tag = 'scratch operand']
  %s0 = inlined_call_operand.vmem [shape: bf16[64,20], index: 0, kind: input, shape index: {}]
  %s1 = inlined_call_operand.hbm [shape: bf16[20,512], index: 1, kind: input, shape index: {}]
  %s2 = inlined_call_operand.hbm [shape: bf16[128,512], index: 2, kind: input, shape index: {}]
  %s3 = inlined_call_operand.vmem [shape: f32[1,512], index: 3, kind: input, shape index: {}]
  %s4 = inlined_call_operand.vmem [shape: bf16[128,128], index: 4, kind: input, shape index: {}]
  %s5 = inlined_call_operand.vmem [shape: f32[1,128], index: 5, kind: input, shape index: {}]
  %s6 = inlined_call_operand.vmem [shape: f32[8,128], index: 6, kind: output, shape index: {}]
  %s7 = sld [smem:[#allocation0]]
  $region42: #{lstm_classifier.1} parent=0
    _
  %s9 = ssub.s32 1, %s7
  %s10 = scalar_select 0, %s9, %s7
  $region1: #{lstm_classifier.1} parent=0
    #allocation3 [shape = 'u8[24576]{0}', space=vmem, size = 0x6000, scoped, tag = 'input window, operand 1, single buffered']
    #allocation4 [shape = 's32[1]{0}', space=sflag, size = 0x4, scoped, tag = 'scoped memory for lstm_classifier.1']
    #allocation5 [shape = 'u8[131072]{0}', space=vmem, size = 0x20000, scoped, tag = 'input window, operand 2, single buffered']
    #allocation6 [shape = 's32[1]{0}', space=sflag, size = 0x4, scoped, tag = 'scoped memory for lstm_classifier.1']
    %11 = vsyncpa [#allocation4], 0
    %12 = vsyncpa [#allocation6], 0
    // Predicated region
    $region2: #{lstm_classifier.1} parent=1 // pred_check
      _
    $region3: #{lstm_classifier.1} parent=1 // pred_check_branch
      %14 = sbr.rel (0) target = $region5
    $region4: #{lstm_classifier.1} parent=1 // pred_region
      _
    $region5: #{lstm_classifier.1} parent=1 // pred_fallthru
      _
    // Predicated region
    $region6: #{lstm_classifier.1} parent=1 // pred_check
      _
    $region7: #{lstm_classifier.1} parent=1 // pred_check_branch
      %16 = sbr.rel (0) target = $region9
    $region8: #{lstm_classifier.1} parent=1 // pred_region
      %18 = vsyncadd [#allocation4], 0
      %s19 = sshll.u32 %s1, 4
      %s20 = int_to_ptr.hbm [resolvable:$true] %s19
      %s21 = sshll.u32 [#allocation3], 4
      %s22 = int_to_ptr.vmem [resolvable:$true] %s21
      %27 = dma.hbm_to_vmem [thread:$0]  %s20, 768, %s22, [#allocation4], 256, 256, 16
    $region9: #{lstm_classifier.1} parent=1 // pred_fallthru
      _
    // Predicated region
    $region10: #{lstm_classifier.1} parent=1 // pred_check
      _
    $region11: #{lstm_classifier.1} parent=1 // pred_check_branch
      %29 = sbr.rel (0) target = $region13
    $region12: #{lstm_classifier.1} parent=1 // pred_region
      %31 = vsyncadd [#allocation6], 0
      %s32 = sshll.u32 %s2, 4
      %s33 = int_to_ptr.hbm [resolvable:$true] %s32
      %s34 = sshll.u32 [#allocation5], 4
      %s35 = int_to_ptr.vmem [resolvable:$true] %s34
      %40 = dma.hbm_to_vmem [thread:$0]  %s33, 4096, %s35, [#allocation6], 256, 256, 16
    $region13: #{lstm_classifier.1} parent=1 // pred_fallthru
      _
    // Predicated region
    $region14: #{lstm_classifier.1} parent=1 // pred_check
      _
    $region15: #{lstm_classifier.1} parent=1 // pred_check_branch
      %42 = sbr.rel (0) target = $region17
    $region16: #{lstm_classifier.1} parent=1 // pred_region
      _
    $region17: #{lstm_classifier.1} parent=1 // pred_fallthru
      _
    // Predicated region
    $region18: #{lstm_classifier.1} parent=1 // pred_check
      _
    $region19: #{lstm_classifier.1} parent=1 // pred_check_branch
      %44 = sbr.rel (0) target = $region21
    $region20: #{lstm_classifier.1} parent=1 // pred_region
      _
    $region21: #{lstm_classifier.1} parent=1 // pred_fallthru
      _
    // Predicated region
    $region22: #{lstm_classifier.1} parent=1 // pred_check
      _
    $region23: #{lstm_classifier.1} parent=1 // pred_check_branch
      %46 = sbr.rel (0) target = $region25
    $region24: #{lstm_classifier.1} parent=1 // pred_region
      _
    $region25: #{lstm_classifier.1} parent=1 // pred_fallthru
      _
    // Predicated region
    $region26: #{lstm_classifier.1} parent=1 // pred_check
      _
    $region27: #{lstm_classifier.1} parent=1 // pred_check_branch
      %48 = sbr.rel (0) target = $region29
    $region28: #{lstm_classifier.1} parent=1 // pred_region
      %50 = dma.done [#allocation4], 768
    $region29: #{lstm_classifier.1} parent=1 // pred_fallthru
      _
    // Predicated region
    $region30: #{lstm_classifier.1} parent=1 // pred_check
      _
    $region31: #{lstm_classifier.1} parent=1 // pred_check_branch
      %52 = sbr.rel (0) target = $region33
    $region32: #{lstm_classifier.1} parent=1 // pred_region
      %54 = dma.done [#allocation6], 4096
    $region33: #{lstm_classifier.1} parent=1 // pred_fallthru
      _
    %v56 = vld [vmem:[%s0] sm:$0xf]
    %v57 = vld [vmem:[%s0 + $0x4] sm:$0xf]
    %v58 = vld [vmem:[%s0 + $0x8] sm:$0xf]
    %v59 = vld [vmem:[%s0 + $0xc] sm:$0xf]
    %v60 = vld [vmem:[%s0 + $0x10] sm:$0xf]
    %v61 = vld [vmem:[%s0 + $0x14] sm:$0xf]
    %v62 = vld [vmem:[%s0 + $0x18] sm:$0xf]
    %v63 = vld [vmem:[%s0 + $0x1c] sm:$0xf]
    %v64 = vld [vmem:[#allocation3] sm:$0xff]
    %v65 = vld [vmem:[#allocation3 + $0x8] sm:$0xff]
    %v66 = vld [vmem:[#allocation3 + $0x10] sm:$0xff]
    %v67 = vld [vmem:[#allocation3 + $0x18] sm:$0xff]
    %v68 = vld [vmem:[#allocation3 + $0x20] sm:$0x33]
    %v69 = vld [vmem:[#allocation3 + $0x28] sm:$0x33]
    %v70 = vld [vmem:[%s3] sm:$0xf]
    %v72 = vperm.slane %v70, 0
    %v73 = vperm.slane %v70, 1
    %v74 = vperm.slane %v70, 2
    %v75 = vperm.slane %v70, 3
    %v88 = vunpack.c.l.b16 %v56
    %v89 = vunpack.c.l.b16 %v57
    %v90 = vunpack.c.l.b16 %v58
    %v91 = vunpack.c.l.b16 %v59
    %v92 = vunpack.c.l.b16 %v60
    %v93 = vunpack.c.l.b16 %v61
    %v94 = vunpack.c.l.b16 %v62
    %v95 = vunpack.c.l.b16 %v63
    %v96 = vpack.c.b16 %v89, %v88
    %v97 = vpack.c.b16 %v91, %v90
    %v98 = vpack.c.b16 %v93, %v92
    %v99 = vpack.c.b16 %v95, %v94
    %v106 = vunpack.c.l.b16 %v64
    %v107 = vunpack.c.h.b16 %v64
    %v108 = vunpack.c.l.b16 %v65
    %v109 = vunpack.c.h.b16 %v65
    %v110 = vunpack.c.l.b16 %v66
    %v111 = vunpack.c.h.b16 %v66
    %v112 = vunpack.c.l.b16 %v67
    %v113 = vunpack.c.h.b16 %v67
    %v114 = vunpack.c.l.b16 %v68
    %v115 = vunpack.c.h.b16 %v68
    %v116 = vunpack.c.l.b16 %v69
    %v117 = vunpack.c.h.b16 %v69
    %v118 = vpack.c.b16 %v110, %v106
    %v119 = vpack.c.b16 %v111, %v107
    %v120 = vpack.c.b16 %v112, %v108
    %v121 = vpack.c.b16 %v113, %v109
    %v122 = vpack.c.b16 %v114, %v114
    %v123 = vpack.c.b16 %v115, %v115
    %v124 = vpack.c.b16 %v116, %v116
    %v125 = vpack.c.b16 %v117, %v117
    %vm130 = vcmask 162816
    %v132 = vsel %vm130, %v96, 0
    %v135 = vsel %vm130, %v97, 0
    %v138 = vsel %vm130, %v98, 0
    %v141 = vsel %vm130, %v99, 0
    %vm143 = vcmask 1041408
    %v145 = vsel %vm143, %v122, 0
    %v148 = vsel %vm143, %v123, 0
    %v151 = vsel %vm143, %v124, 0
    %v154 = vsel %vm143, %v125, 0
    %156 = vmatpush.bf16.msra.mxu0 0
    %157 = vmatpush.bf16.msra.mxu0 0
    %158 = vmatpush.bf16.msra.mxu0 0
    %159 = vmatpush.bf16.msra.mxu0 0
    %160 = vmatpush.bf16.msra.mxu0 0
    %161 = vmatpush.bf16.msra.mxu0 0
    %162 = vmatpush.bf16.msra.mxu0 %v145
    %163 = vmatpush.bf16.msra.mxu0 %v118
    %164 = vmatmul.bf16.gmra.mxu0 %v132
    %v165 = vpop.f32.mrf.mxu0
    %v166 = vadd.f32 %v72, %v165
    %v167 = vpop.f32.mrf.mxu0
    %v168 = vadd.f32 %v72, %v167
    %169 = vmatmul.bf16.gmra.mxu0 %v135
    %v170 = vpop.f32.mrf.mxu0
    %v171 = vadd.f32 %v72, %v170
    %v172 = vpop.f32.mrf.mxu0
    %v173 = vadd.f32 %v72, %v172
    %174 = vmatmul.bf16.gmra.mxu0 %v138
    %v175 = vpop.f32.mrf.mxu0
    %v176 = vadd.f32 %v72, %v175
    %v177 = vpop.f32.mrf.mxu0
    %v178 = vadd.f32 %v72, %v177
    %179 = vmatmul.bf16.gmra.mxu0 %v141
    %v180 = vpop.f32.mrf.mxu0
    %v181 = vadd.f32 %v72, %v180
    %v182 = vpop.f32.mrf.mxu0
    %v183 = vadd.f32 %v72, %v182
    %184 = vdwg.mxu0
    %185 = vmatpush.bf16.msra.mxu0 0
    %186 = vmatpush.bf16.msra.mxu0 0
    %187 = vmatpush.bf16.msra.mxu0 0
    %188 = vmatpush.bf16.msra.mxu0 0
    %189 = vmatpush.bf16.msra.mxu0 0
    %190 = vmatpush.bf16.msra.mxu0 0
    %191 = vmatpush.bf16.msra.mxu0 %v148
    %192 = vmatpush.bf16.msra.mxu0 %v119
    %193 = vmatmul.bf16.gmra.mxu0 %v132
    %v194 = vpop.f32.mrf.mxu0
    %v195 = vadd.f32 %v73, %v194
    %v196 = vpop.f32.mrf.mxu0
    %v197 = vadd.f32 %v73, %v196
    %198 = vmatmul.bf16.gmra.mxu0 %v135
    %v199 = vpop.f32.mrf.mxu0
    %v200 = vadd.f32 %v73, %v199
    %v201 = vpop.f32.mrf.mxu0
    %v202 = vadd.f32 %v73, %v201
    %203 = vmatmul.bf16.gmra.mxu0 %v138
    %v204 = vpop.f32.mrf.mxu0
    %v205 = vadd.f32 %v73, %v204
    %v206 = vpop.f32.mrf.mxu0
    %v207 = vadd.f32 %v73, %v206
    %208 = vmatmul.bf16.gmra.mxu0 %v141
    %v209 = vpop.f32.mrf.mxu0
    %v210 = vadd.f32 %v73, %v209
    %v211 = vpop.f32.mrf.mxu0
    %v212 = vadd.f32 %v73, %v211
    %213 = vdwg.mxu0
    %214 = vmatpush.bf16.msra.mxu0 0
    %215 = vmatpush.bf16.msra.mxu0 0
    %216 = vmatpush.bf16.msra.mxu0 0
    %217 = vmatpush.bf16.msra.mxu0 0
    %218 = vmatpush.bf16.msra.mxu0 0
    %219 = vmatpush.bf16.msra.mxu0 0
    %220 = vmatpush.bf16.msra.mxu0 %v151
    %221 = vmatpush.bf16.msra.mxu0 %v120
    %222 = vmatmul.bf16.gmra.mxu0 %v132
    %v223 = vpop.f32.mrf.mxu0
    %v224 = vadd.f32 %v74, %v223
    %v225 = vpop.f32.mrf.mxu0
    %v226 = vadd.f32 %v74, %v225
    %227 = vmatmul.bf16.gmra.mxu0 %v135
    %v228 = vpop.f32.mrf.mxu0
    %v229 = vadd.f32 %v74, %v228
    %v230 = vpop.f32.mrf.mxu0
    %v231 = vadd.f32 %v74, %v230
    %232 = vmatmul.bf16.gmra.mxu0 %v138
    %v233 = vpop.f32.mrf.mxu0
    %v234 = vadd.f32 %v74, %v233
    %v235 = vpop.f32.mrf.mxu0
    %v236 = vadd.f32 %v74, %v235
    %237 = vmatmul.bf16.gmra.mxu0 %v141
    %v238 = vpop.f32.mrf.mxu0
    %v239 = vadd.f32 %v74, %v238
    %v240 = vpop.f32.mrf.mxu0
    %v241 = vadd.f32 %v74, %v240
    %242 = vdwg.mxu0
    %243 = vmatpush.bf16.msra.mxu0 0
    %244 = vmatpush.bf16.msra.mxu0 0
    %245 = vmatpush.bf16.msra.mxu0 0
    %246 = vmatpush.bf16.msra.mxu0 0
    %247 = vmatpush.bf16.msra.mxu0 0
    %248 = vmatpush.bf16.msra.mxu0 0
    %249 = vmatpush.bf16.msra.mxu0 %v154
    %250 = vmatpush.bf16.msra.mxu0 %v121
    %251 = vmatmul.bf16.gmra.mxu0 %v132
    %v252 = vpop.f32.mrf.mxu0
    %v253 = vadd.f32 %v75, %v252
    %v254 = vpop.f32.mrf.mxu0
    %v255 = vadd.f32 %v75, %v254
    %256 = vmatmul.bf16.gmra.mxu0 %v135
    %v257 = vpop.f32.mrf.mxu0
    %v258 = vadd.f32 %v75, %v257
    %v259 = vpop.f32.mrf.mxu0
    %v260 = vadd.f32 %v75, %v259
    %261 = vmatmul.bf16.gmra.mxu0 %v138
    %v262 = vpop.f32.mrf.mxu0
    %v263 = vadd.f32 %v75, %v262
    %v264 = vpop.f32.mrf.mxu0
    %v265 = vadd.f32 %v75, %v264
    %266 = vmatmul.bf16.gmra.mxu0 %v141
    %v267 = vpop.f32.mrf.mxu0
    %v268 = vadd.f32 %v75, %v267
    %v269 = vpop.f32.mrf.mxu0
    %v270 = vadd.f32 %v75, %v269
    %271 = vdwg.mxu0
    %272 = vst [vmem:[#allocation2] sm:$0xff] %v166
    %273 = vst [vmem:[#allocation2 + $0x8] sm:$0xff] %v195
    %274 = vst [vmem:[#allocation2 + $0x10] sm:$0xff] %v224
    %275 = vst [vmem:[#allocation2 + $0x18] sm:$0xff] %v253
    %276 = vst [vmem:[#allocation2 + $0x20] sm:$0xff] %v168
    %277 = vst [vmem:[#allocation2 + $0x28] sm:$0xff] %v197
    %278 = vst [vmem:[#allocation2 + $0x30] sm:$0xff] %v226
    %279 = vst [vmem:[#allocation2 + $0x38] sm:$0xff] %v255
    %280 = vst [vmem:[#allocation2 + $0x40] sm:$0xff] %v171
    %281 = vst [vmem:[#allocation2 + $0x48] sm:$0xff] %v200
    %282 = vst [vmem:[#allocation2 + $0x50] sm:$0xff] %v229
    %283 = vst [vmem:[#allocation2 + $0x58] sm:$0xff] %v258
    %284 = vst [vmem:[#allocation2 + $0x60] sm:$0xff] %v173
    %285 = vst [vmem:[#allocation2 + $0x68] sm:$0xff] %v202
    %286 = vst [vmem:[#allocation2 + $0x70] sm:$0xff] %v231
    %287 = vst [vmem:[#allocation2 + $0x78] sm:$0xff] %v260
    %288 = vst [vmem:[#allocation2 + $0x80] sm:$0xff] %v176
    %289 = vst [vmem:[#allocation2 + $0x88] sm:$0xff] %v205
    %290 = vst [vmem:[#allocation2 + $0x90] sm:$0xff] %v234
    %291 = vst [vmem:[#allocation2 + $0x98] sm:$0xff] %v263
    %292 = vst [vmem:[#allocation2 + $0xa0] sm:$0xff] %v178
    %293 = vst [vmem:[#allocation2 + $0xa8] sm:$0xff] %v207
    %294 = vst [vmem:[#allocation2 + $0xb0] sm:$0xff] %v236
    %295 = vst [vmem:[#allocation2 + $0xb8] sm:$0xff] %v265
    %296 = vst [vmem:[#allocation2 + $0xc0] sm:$0xff] %v181
    %297 = vst [vmem:[#allocation2 + $0xc8] sm:$0xff] %v210
    %298 = vst [vmem:[#allocation2 + $0xd0] sm:$0xff] %v239
    %299 = vst [vmem:[#allocation2 + $0xd8] sm:$0xff] %v268
    %300 = vst [vmem:[#allocation2 + $0xe0] sm:$0xff] %v183
    %301 = vst [vmem:[#allocation2 + $0xe8] sm:$0xff] %v212
    %302 = vst [vmem:[#allocation2 + $0xf0] sm:$0xff] %v241
    %303 = vst [vmem:[#allocation2 + $0xf8] sm:$0xff] %v270
    %v304 = vld [vmem:[#allocation5] sm:$0xff]
    %v305 = vld [vmem:[#allocation5 + $0x8] sm:$0xff]
    %v306 = vld [vmem:[#allocation5 + $0x10] sm:$0xff]
    %v307 = vld [vmem:[#allocation5 + $0x18] sm:$0xff]
    %v308 = vld [vmem:[#allocation5 + $0x20] sm:$0xff]
    %v309 = vld [vmem:[#allocation5 + $0x28] sm:$0xff]
    %v310 = vld [vmem:[#allocation5 + $0x30] sm:$0xff]
    %v311 = vld [vmem:[#allocation5 + $0x38] sm:$0xff]
    %v312 = vld [vmem:[#allocation5 + $0x40] sm:$0xff]
    %v313 = vld [vmem:[#allocation5 + $0x48] sm:$0xff]
    %v314 = vld [vmem:[#allocation5 + $0x50] sm:$0xff]
    %v315 = vld [vmem:[#allocation5 + $0x58] sm:$0xff]
    %v316 = vld [vmem:[#allocation5 + $0x60] sm:$0xff]
    %v317 = vld [vmem:[#allocation5 + $0x68] sm:$0xff]
    %v318 = vld [vmem:[#allocation5 + $0x70] sm:$0xff]
    %v319 = vld [vmem:[#allocation5 + $0x78] sm:$0xff]
    %v320 = vld [vmem:[#allocation5 + $0x80] sm:$0xff]
    %v321 = vld [vmem:[#allocation5 + $0x88] sm:$0xff]
    %v322 = vld [vmem:[#allocation5 + $0x90] sm:$0xff]
    %v323 = vld [vmem:[#allocation5 + $0x98] sm:$0xff]
    %v324 = vld [vmem:[#allocation5 + $0xa0] sm:$0xff]
    %v325 = vld [vmem:[#allocation5 + $0xa8] sm:$0xff]
    %v326 = vld [vmem:[#allocation5 + $0xb0] sm:$0xff]
    %v327 = vld [vmem:[#allocation5 + $0xb8] sm:$0xff]
    %v328 = vld [vmem:[#allocation5 + $0xc0] sm:$0xff]
    %v329 = vld [vmem:[#allocation5 + $0xc8] sm:$0xff]
    %v330 = vld [vmem:[#allocation5 + $0xd0] sm:$0xff]
    %v331 = vld [vmem:[#allocation5 + $0xd8] sm:$0xff]
    %v332 = vld [vmem:[#allocation5 + $0xe0] sm:$0xff]
    %v333 = vld [vmem:[#allocation5 + $0xe8] sm:$0xff]
    %v334 = vld [vmem:[#allocation5 + $0xf0] sm:$0xff]
    %v335 = vld [vmem:[#allocation5 + $0xf8] sm:$0xff]
    %v336 = vld [vmem:[#allocation2] sm:$0xff]
    %v337 = vld [vmem:[#allocation2 + $0x8] sm:$0xff]
    %v338 = vld [vmem:[#allocation2 + $0x10] sm:$0xff]
    %v339 = vld [vmem:[#allocation2 + $0x18] sm:$0xff]
    %v372 = vunpack.c.l.b16 %v304
    %v373 = vunpack.c.h.b16 %v304
    %v374 = vunpack.c.l.b16 %v305
    %v375 = vunpack.c.h.b16 %v305
    %v376 = vunpack.c.l.b16 %v306
    %v377 = vunpack.c.h.b16 %v306
    %v378 = vunpack.c.l.b16 %v307
    %v379 = vunpack.c.h.b16 %v307
    %v380 = vunpack.c.l.b16 %v308
    %v381 = vunpack.c.h.b16 %v308
    %v382 = vunpack.c.l.b16 %v309
    %v383 = vunpack.c.h.b16 %v309
    %v384 = vunpack.c.l.b16 %v310
    %v385 = vunpack.c.h.b16 %v310
    %v386 = vunpack.c.l.b16 %v311
    %v387 = vunpack.c.h.b16 %v311
    %v388 = vunpack.c.l.b16 %v312
    %v389 = vunpack.c.h.b16 %v312
    %v390 = vunpack.c.l.b16 %v313
    %v391 = vunpack.c.h.b16 %v313
    %v392 = vunpack.c.l.b16 %v314
    %v393 = vunpack.c.h.b16 %v314
    %v394 = vunpack.c.l.b16 %v315
    %v395 = vunpack.c.h.b16 %v315
    %v396 = vunpack.c.l.b16 %v316
    %v397 = vunpack.c.h.b16 %v316
    %v398 = vunpack.c.l.b16 %v317
    %v399 = vunpack.c.h.b16 %v317
    %v400 = vunpack.c.l.b16 %v318
    %v401 = vunpack.c.h.b16 %v318
    %v402 = vunpack.c.l.b16 %v319
    %v403 = vunpack.c.h.b16 %v319
    %v404 = vunpack.c.l.b16 %v320
    %v405 = vunpack.c.h.b16 %v320
    %v406 = vunpack.c.l.b16 %v321
    %v407 = vunpack.c.h.b16 %v321
    %v408 = vunpack.c.l.b16 %v322
    %v409 = vunpack.c.h.b16 %v322
    %v410 = vunpack.c.l.b16 %v323
    %v411 = vunpack.c.h.b16 %v323
    %v412 = vunpack.c.l.b16 %v324
    %v413 = vunpack.c.h.b16 %v324
    %v414 = vunpack.c.l.b16 %v325
    %v415 = vunpack.c.h.b16 %v325
    %v416 = vunpack.c.l.b16 %v326
    %v417 = vunpack.c.h.b16 %v326
    %v418 = vunpack.c.l.b16 %v327
    %v419 = vunpack.c.h.b16 %v327
    %v420 = vunpack.c.l.b16 %v328
    %v421 = vunpack.c.h.b16 %v328
    %v422 = vunpack.c.l.b16 %v329
    %v423 = vunpack.c.h.b16 %v329
    %v424 = vunpack.c.l.b16 %v330
    %v425 = vunpack.c.h.b16 %v330
    %v426 = vunpack.c.l.b16 %v331
    %v427 = vunpack.c.h.b16 %v331
    %v428 = vunpack.c.l.b16 %v332
    %v429 = vunpack.c.h.b16 %v332
    %v430 = vunpack.c.l.b16 %v333
    %v431 = vunpack.c.h.b16 %v333
    %v432 = vunpack.c.l.b16 %v334
    %v433 = vunpack.c.h.b16 %v334
    %v434 = vunpack.c.l.b16 %v335
    %v435 = vunpack.c.h.b16 %v335
    %v436 = vpack.c.b16 %v376, %v372
    %v437 = vpack.c.b16 %v377, %v373
    %v438 = vpack.c.b16 %v378, %v374
    %v439 = vpack.c.b16 %v379, %v375
    %v440 = vpack.c.b16 %v384, %v380
    %v441 = vpack.c.b16 %v385, %v381
    %v442 = vpack.c.b16 %v386, %v382
    %v443 = vpack.c.b16 %v387, %v383
    %v444 = vpack.c.b16 %v392, %v388
    %v445 = vpack.c.b16 %v393, %v389
    %v446 = vpack.c.b16 %v394, %v390
    %v447 = vpack.c.b16 %v395, %v391
    %v448 = vpack.c.b16 %v400, %v396
    %v449 = vpack.c.b16 %v401, %v397
    %v450 = vpack.c.b16 %v402, %v398
    %v451 = vpack.c.b16 %v403, %v399
    %v452 = vpack.c.b16 %v408, %v404
    %v453 = vpack.c.b16 %v409, %v405
    %v454 = vpack.c.b16 %v410, %v406
    %v455 = vpack.c.b16 %v411, %v407
    %v456 = vpack.c.b16 %v416, %v412
    %v457 = vpack.c.b16 %v417, %v413
    %v458 = vpack.c.b16 %v418, %v414
    %v459 = vpack.c.b16 %v419, %v415
    %v460 = vpack.c.b16 %v424, %v420
    %v461 = vpack.c.b16 %v425, %v421
    %v462 = vpack.c.b16 %v426, %v422
    %v463 = vpack.c.b16 %v427, %v423
    %v464 = vpack.c.b16 %v432, %v428
    %v465 = vpack.c.b16 %v433, %v429
    %v466 = vpack.c.b16 %v434, %v430
    %v467 = vpack.c.b16 %v435, %v431
    %500 = vmatpush.bf16.msra.mxu0 %v464
    %501 = vmatpush.bf16.msra.mxu0 %v460
    %502 = vmatpush.bf16.msra.mxu0 %v456
    %503 = vmatpush.bf16.msra.mxu0 %v452
    %504 = vmatpush.bf16.msra.mxu0 %v448
    %505 = vmatpush.bf16.msra.mxu0 %v444
    %506 = vmatpush.bf16.msra.mxu0 %v440
    %507 = vmatpush.bf16.msra.mxu0 %v436
    %508 = vmatmul.bf16.gmra.mxu0 0
    %v509 = vpop.f32.mrf.mxu0
    %v510 = vadd.f32 0.0, %v509
    %v511 = vpop.f32.mrf.mxu0
    %512 = vdwg.mxu0
    %513 = vmatpush.bf16.msra.mxu0 %v465
    %514 = vmatpush.bf16.msra.mxu0 %v461
    %515 = vmatpush.bf16.msra.mxu0 %v457
    %516 = vmatpush.bf16.msra.mxu0 %v453
    %517 = vmatpush.bf16.msra.mxu0 %v449
    %518 = vmatpush.bf16.msra.mxu0 %v445
    %519 = vmatpush.bf16.msra.mxu0 %v441
    %520 = vmatpush.bf16.msra.mxu0 %v437
    %521 = vmatmul.bf16.gmra.mxu0 0
    %v522 = vpop.f32.mrf.mxu0
    %v523 = vadd.f32 0.0, %v522
    %v524 = vpop.f32.mrf.mxu0
    %525 = vdwg.mxu0
    %526 = vmatpush.bf16.msra.mxu0 %v466
    %527 = vmatpush.bf16.msra.mxu0 %v462
    %528 = vmatpush.bf16.msra.mxu0 %v458
    %529 = vmatpush.bf16.msra.mxu0 %v454
    %530 = vmatpush.bf16.msra.mxu0 %v450
    %531 = vmatpush.bf16.msra.mxu0 %v446
    %532 = vmatpush.bf16.msra.mxu0 %v442
    %533 = vmatpush.bf16.msra.mxu0 %v438
    %534 = vmatmul.bf16.gmra.mxu0 0
    %v535 = vpop.f32.mrf.mxu0
    %v536 = vadd.f32 0.0, %v535
    %v537 = vpop.f32.mrf.mxu0
    %538 = vdwg.mxu0
    %539 = vmatpush.bf16.msra.mxu0 %v467
    %540 = vmatpush.bf16.msra.mxu0 %v463
    %541 = vmatpush.bf16.msra.mxu0 %v459
    %542 = vmatpush.bf16.msra.mxu0 %v455
    %543 = vmatpush.bf16.msra.mxu0 %v451
    %544 = vmatpush.bf16.msra.mxu0 %v447
    %545 = vmatpush.bf16.msra.mxu0 %v443
    %546 = vmatpush.bf16.msra.mxu0 %v439
    %547 = vmatmul.bf16.gmra.mxu0 0
    %v548 = vpop.f32.mrf.mxu0
    %v549 = vadd.f32 0.0, %v548
    %v550 = vpop.f32.mrf.mxu0
    %551 = vdwg.mxu0
    %v552 = vadd.f32 %v336, %v510
    %v553 = vadd.f32 %v337, %v523
    %v554 = vadd.f32 %v338, %v536
    %v555 = vadd.f32 %v339, %v549
    %v556 = vxor.u32 %v552, 2147483648
    %v557 = vmul.f32 %v556, 1.442695
    %v558 = vpow.pop %v557
    %v559 = vadd.f32 %v558, 1.0
    %v560 = vrcp.pop %v559
    %v561 = vmul.f32 %v559, %v560
    %v562 = vsub.f32 1.0, %v561
    %v563 = vmul.f32 %v560, %v562
    %v564 = vadd.f32 %v560, %v563
    %vm565 = vweird.f32 %v559
    %vm566 = vweird.f32 %v560
    %vm567 = vmor %vm565, %vm566
    %v568 = vsel %vm567, %v560, %v564
    %v569 = vand.u32 2147483647, %v559
    %vm570 = vcmp.eq.f32.partialorder %v569, 8.507059e+37
    %v571 = vand.u32 %v559, 2147483648
    %v572 = vor.u32 1.1754944e-38, %v571
    %v573 = vsel %vm570, %v572, %v568
    %v574 = vmul.f32 1.0, %v573
    %v575 = vxor.u32 %v553, 2147483648
    %v576 = vmul.f32 %v575, 1.442695
    %v577 = vpow.pop %v576
    %v578 = vadd.f32 %v577, 1.0
    %v579 = vrcp.pop %v578
    %v580 = vmul.f32 %v578, %v579
    %v581 = vsub.f32 1.0, %v580
    %v582 = vmul.f32 %v579, %v581
    %v583 = vadd.f32 %v579, %v582
    %vm584 = vweird.f32 %v578
    %vm585 = vweird.f32 %v579
    %vm586 = vmor %vm584, %vm585
    %v587 = vsel %vm586, %v579, %v583
    %v588 = vand.u32 2147483647, %v578
    %vm589 = vcmp.eq.f32.partialorder %v588, 8.507059e+37
    %v590 = vand.u32 %v578, 2147483648
    %v591 = vor.u32 1.1754944e-38, %v590
    %v592 = vsel %vm589, %v591, %v587
    %v593 = vmul.f32 1.0, %v592
    %v594 = vtanh.pop %v554
    %v595 = vxor.u32 %v555, 2147483648
    %v596 = vmul.f32 %v595, 1.442695
    %v597 = vpow.pop %v596
    %v598 = vadd.f32 %v597, 1.0
    %v599 = vrcp.pop %v598
    %v600 = vmul.f32 %v598, %v599
    %v601 = vsub.f32 1.0, %v600
    %v602 = vmul.f32 %v599, %v601
    %v603 = vadd.f32 %v599, %v602
    %vm604 = vweird.f32 %v598
    %vm605 = vweird.f32 %v599
    %vm606 = vmor %vm604, %vm605
    %v607 = vsel %vm606, %v599, %v603
    %v608 = vand.u32 2147483647, %v598
    %vm609 = vcmp.eq.f32.partialorder %v608, 8.507059e+37
    %v610 = vand.u32 %v598, 2147483648
    %v611 = vor.u32 1.1754944e-38, %v610
    %v612 = vsel %vm609, %v611, %v607
    %v613 = vmul.f32 1.0, %v612
    %v614 = vmul.f32 %v593, 0.0
    %v615 = vmul.f32 %v574, %v594
    %v616 = vadd.f32 %v614, %v615
    %v617 = vtanh.pop %v616
    %v618 = vmul.f32 %v613, %v617
    %v619 = vld [vmem:[#allocation2 + $0x20] sm:$0xff]
    %v620 = vld [vmem:[#allocation2 + $0x28] sm:$0xff]
    %v621 = vld [vmem:[#allocation2 + $0x30] sm:$0xff]
    %v622 = vld [vmem:[#allocation2 + $0x38] sm:$0xff]
    %v623 = vpack.c.bf16 %v618, %v618
    %624 = vmatpush.bf16.msra.mxu0 %v464
    %625 = vmatpush.bf16.msra.mxu0 %v460
    %626 = vmatpush.bf16.msra.mxu0 %v456
    %627 = vmatpush.bf16.msra.mxu0 %v452
    %628 = vmatpush.bf16.msra.mxu0 %v448
    %629 = vmatpush.bf16.msra.mxu0 %v444
    %630 = vmatpush.bf16.msra.mxu0 %v440
    %631 = vmatpush.bf16.msra.mxu0 %v436
    %632 = vmatmul.bf16.gmra.mxu0 %v623
    %v633 = vpop.f32.mrf.mxu0
    %v634 = vadd.f32 0.0, %v633
    %v635 = vpop.f32.mrf.mxu0
    %636 = vdwg.mxu0
    %637 = vmatpush.bf16.msra.mxu0 %v465
    %638 = vmatpush.bf16.msra.mxu0 %v461
    %639 = vmatpush.bf16.msra.mxu0 %v457
    %640 = vmatpush.bf16.msra.mxu0 %v453
    %641 = vmatpush.bf16.msra.mxu0 %v449
    %642 = vmatpush.bf16.msra.mxu0 %v445
    %643 = vmatpush.bf16.msra.mxu0 %v441
    %644 = vmatpush.bf16.msra.mxu0 %v437
    %645 = vmatmul.bf16.gmra.mxu0 %v623
    %v646 = vpop.f32.mrf.mxu0
    %v647 = vadd.f32 0.0, %v646
    %v648 = vpop.f32.mrf.mxu0
    %649 = vdwg.mxu0
    %650 = vmatpush.bf16.msra.mxu0 %v466
    %651 = vmatpush.bf16.msra.mxu0 %v462
    %652 = vmatpush.bf16.msra.mxu0 %v458
    %653 = vmatpush.bf16.msra.mxu0 %v454
    %654 = vmatpush.bf16.msra.mxu0 %v450
    %655 = vmatpush.bf16.msra.mxu0 %v446
    %656 = vmatpush.bf16.msra.mxu0 %v442
    %657 = vmatpush.bf16.msra.mxu0 %v438
    %658 = vmatmul.bf16.gmra.mxu0 %v623
    %v659 = vpop.f32.mrf.mxu0
    %v660 = vadd.f32 0.0, %v659
    %v661 = vpop.f32.mrf.mxu0
    %662 = vdwg.mxu0
    %663 = vmatpush.bf16.msra.mxu0 %v467
    %664 = vmatpush.bf16.msra.mxu0 %v463
    %665 = vmatpush.bf16.msra.mxu0 %v459
    %666 = vmatpush.bf16.msra.mxu0 %v455
    %667 = vmatpush.bf16.msra.mxu0 %v451
    %668 = vmatpush.bf16.msra.mxu0 %v447
    %669 = vmatpush.bf16.msra.mxu0 %v443
    %670 = vmatpush.bf16.msra.mxu0 %v439
    %671 = vmatmul.bf16.gmra.mxu0 %v623
    %v672 = vpop.f32.mrf.mxu0
    %v673 = vadd.f32 0.0, %v672
    %v674 = vpop.f32.mrf.mxu0
    %675 = vdwg.mxu0
    %v676 = vadd.f32 %v619, %v634
    %v677 = vadd.f32 %v620, %v647
    %v678 = vadd.f32 %v621, %v660
    %v679 = vadd.f32 %v622, %v673
    %v680 = vxor.u32 %v676, 2147483648
    %v681 = vmul.f32 %v680, 1.442695
    %v682 = vpow.pop %v681
    %v683 = vadd.f32 %v682, 1.0
    %v684 = vrcp.pop %v683
    %v685 = vmul.f32 %v683, %v684
    %v686 = vsub.f32 1.0, %v685
    %v687 = vmul.f32 %v684, %v686
    %v688 = vadd.f32 %v684, %v687
    %vm689 = vweird.f32 %v683
    %vm690 = vweird.f32 %v684
    %vm691 = vmor %vm689, %vm690
    %v692 = vsel %vm691, %v684, %v688
    %v693 = vand.u32 2147483647, %v683
    %vm694 = vcmp.eq.f32.partialorder %v693, 8.507059e+37
    %v695 = vand.u32 %v683, 2147483648
    %v696 = vor.u32 1.1754944e-38, %v695
    %v697 = vsel %vm694, %v696, %v692
    %v698 = vmul.f32 1.0, %v697
    %v699 = vxor.u32 %v677, 2147483648
    %v700 = vmul.f32 %v699, 1.442695
    %v701 = vpow.pop %v700
    %v702 = vadd.f32 %v701, 1.0
    %v703 = vrcp.pop %v702
    %v704 = vmul.f32 %v702, %v703
    %v705 = vsub.f32 1.0, %v704
    %v706 = vmul.f32 %v703, %v705
    %v707 = vadd.f32 %v703, %v706
    %vm708 = vweird.f32 %v702
    %vm709 = vweird.f32 %v703
    %vm710 = vmor %vm708, %vm709
    %v711 = vsel %vm710, %v703, %v707
    %v712 = vand.u32 2147483647, %v702
    %vm713 = vcmp.eq.f32.partialorder %v712, 8.507059e+37
    %v714 = vand.u32 %v702, 2147483648
    %v715 = vor.u32 1.1754944e-38, %v714
    %v716 = vsel %vm713, %v715, %v711
    %v717 = vmul.f32 1.0, %v716
    %v718 = vtanh.pop %v678
    %v719 = vxor.u32 %v679, 2147483648
    %v720 = vmul.f32 %v719, 1.442695
    %v721 = vpow.pop %v720
    %v722 = vadd.f32 %v721, 1.0
    %v723 = vrcp.pop %v722
    %v724 = vmul.f32 %v722, %v723
    %v725 = vsub.f32 1.0, %v724
    %v726 = vmul.f32 %v723, %v725
    %v727 = vadd.f32 %v723, %v726
    %vm728 = vweird.f32 %v722
    %vm729 = vweird.f32 %v723
    %vm730 = vmor %vm728, %vm729
    %v731 = vsel %vm730, %v723, %v727
    %v732 = vand.u32 2147483647, %v722
    %vm733 = vcmp.eq.f32.partialorder %v732, 8.507059e+37
    %v734 = vand.u32 %v722, 2147483648
    %v735 = vor.u32 1.1754944e-38, %v734
    %v736 = vsel %vm733, %v735, %v731
    %v737 = vmul.f32 1.0, %v736
    %v738 = vmul.f32 %v717, %v616
    %v739 = vmul.f32 %v698, %v718
    %v740 = vadd.f32 %v738, %v739
    %v741 = vtanh.pop %v740
    %v742 = vmul.f32 %v737, %v741
    %v743 = vld [vmem:[#allocation2 + $0x40] sm:$0xff]
    %v744 = vld [vmem:[#allocation2 + $0x48] sm:$0xff]
    %v745 = vld [vmem:[#allocation2 + $0x50] sm:$0xff]
    %v746 = vld [vmem:[#allocation2 + $0x58] sm:$0xff]
    %v747 = vpack.c.bf16 %v742, %v742
    %748 = vmatpush.bf16.msra.mxu0 %v464
    %749 = vmatpush.bf16.msra.mxu0 %v460
    %750 = vmatpush.bf16.msra.mxu0 %v456
    %751 = vmatpush.bf16.msra.mxu0 %v452
    %752 = vmatpush.bf16.msra.mxu0 %v448
    %753 = vmatpush.bf16.msra.mxu0 %v444
    %754 = vmatpush.bf16.msra.mxu0 %v440
    %755 = vmatpush.bf16.msra.mxu0 %v436
    %756 = vmatmul.bf16.gmra.mxu0 %v747
    %v757 = vpop.f32.mrf.mxu0
    %v758 = vadd.f32 0.0, %v757
    %v759 = vpop.f32.mrf.mxu0
    %760 = vdwg.mxu0
    %761 = vmatpush.bf16.msra.mxu0 %v465
    %762 = vmatpush.bf16.msra.mxu0 %v461
    %763 = vmatpush.bf16.msra.mxu0 %v457
    %764 = vmatpush.bf16.msra.mxu0 %v453
    %765 = vmatpush.bf16.msra.mxu0 %v449
    %766 = vmatpush.bf16.msra.mxu0 %v445
    %767 = vmatpush.bf16.msra.mxu0 %v441
    %768 = vmatpush.bf16.msra.mxu0 %v437
    %769 = vmatmul.bf16.gmra.mxu0 %v747
    %v770 = vpop.f32.mrf.mxu0
    %v771 = vadd.f32 0.0, %v770
    %v772 = vpop.f32.mrf.mxu0
    %773 = vdwg.mxu0
    %774 = vmatpush.bf16.msra.mxu0 %v466
    %775 = vmatpush.bf16.msra.mxu0 %v462
    %776 = vmatpush.bf16.msra.mxu0 %v458
    %777 = vmatpush.bf16.msra.mxu0 %v454
    %778 = vmatpush.bf16.msra.mxu0 %v450
    %779 = vmatpush.bf16.msra.mxu0 %v446
    %780 = vmatpush.bf16.msra.mxu0 %v442
    %781 = vmatpush.bf16.msra.mxu0 %v438
    %782 = vmatmul.bf16.gmra.mxu0 %v747
    %v783 = vpop.f32.mrf.mxu0
    %v784 = vadd.f32 0.0, %v783
    %v785 = vpop.f32.mrf.mxu0
    %786 = vdwg.mxu0
    %787 = vmatpush.bf16.msra.mxu0 %v467
    %788 = vmatpush.bf16.msra.mxu0 %v463
    %789 = vmatpush.bf16.msra.mxu0 %v459
    %790 = vmatpush.bf16.msra.mxu0 %v455
    %791 = vmatpush.bf16.msra.mxu0 %v451
    %792 = vmatpush.bf16.msra.mxu0 %v447
    %793 = vmatpush.bf16.msra.mxu0 %v443
    %794 = vmatpush.bf16.msra.mxu0 %v439
    %795 = vmatmul.bf16.gmra.mxu0 %v747
    %v796 = vpop.f32.mrf.mxu0
    %v797 = vadd.f32 0.0, %v796
    %v798 = vpop.f32.mrf.mxu0
    %799 = vdwg.mxu0
    %v800 = vadd.f32 %v743, %v758
    %v801 = vadd.f32 %v744, %v771
    %v802 = vadd.f32 %v745, %v784
    %v803 = vadd.f32 %v746, %v797
    %v804 = vxor.u32 %v800, 2147483648
    %v805 = vmul.f32 %v804, 1.442695
    %v806 = vpow.pop %v805
    %v807 = vadd.f32 %v806, 1.0
    %v808 = vrcp.pop %v807
    %v809 = vmul.f32 %v807, %v808
    %v810 = vsub.f32 1.0, %v809
    %v811 = vmul.f32 %v808, %v810
    %v812 = vadd.f32 %v808, %v811
    %vm813 = vweird.f32 %v807
    %vm814 = vweird.f32 %v808
    %vm815 = vmor %vm813, %vm814
    %v816 = vsel %vm815, %v808, %v812
    %v817 = vand.u32 2147483647, %v807
    %vm818 = vcmp.eq.f32.partialorder %v817, 8.507059e+37
    %v819 = vand.u32 %v807, 2147483648
    %v820 = vor.u32 1.1754944e-38, %v819
    %v821 = vsel %vm818, %v820, %v816
    %v822 = vmul.f32 1.0, %v821
    %v823 = vxor.u32 %v801, 2147483648
    %v824 = vmul.f32 %v823, 1.442695
    %v825 = vpow.pop %v824
    %v826 = vadd.f32 %v825, 1.0
    %v827 = vrcp.pop %v826
    %v828 = vmul.f32 %v826, %v827
    %v829 = vsub.f32 1.0, %v828
    %v830 = vmul.f32 %v827, %v829
    %v831 = vadd.f32 %v827, %v830
    %vm832 = vweird.f32 %v826
    %vm833 = vweird.f32 %v827
    %vm834 = vmor %vm832, %vm833
    %v835 = vsel %vm834, %v827, %v831
    %v836 = vand.u32 2147483647, %v826
    %vm837 = vcmp.eq.f32.partialorder %v836, 8.507059e+37
    %v838 = vand.u32 %v826, 2147483648
    %v839 = vor.u32 1.1754944e-38, %v838
    %v840 = vsel %vm837, %v839, %v835
    %v841 = vmul.f32 1.0, %v840
    %v842 = vtanh.pop %v802
    %v843 = vxor.u32 %v803, 2147483648
    %v844 = vmul.f32 %v843, 1.442695
    %v845 = vpow.pop %v844
    %v846 = vadd.f32 %v845, 1.0
    %v847 = vrcp.pop %v846
    %v848 = vmul.f32 %v846, %v847
    %v849 = vsub.f32 1.0, %v848
    %v850 = vmul.f32 %v847, %v849
    %v851 = vadd.f32 %v847, %v850
    %vm852 = vweird.f32 %v846
    %vm853 = vweird.f32 %v847
    %vm854 = vmor %vm852, %vm853
    %v855 = vsel %vm854, %v847, %v851
    %v856 = vand.u32 2147483647, %v846
    %vm857 = vcmp.eq.f32.partialorder %v856, 8.507059e+37
    %v858 = vand.u32 %v846, 2147483648
    %v859 = vor.u32 1.1754944e-38, %v858
    %v860 = vsel %vm857, %v859, %v855
    %v861 = vmul.f32 1.0, %v860
    %v862 = vmul.f32 %v841, %v740
    %v863 = vmul.f32 %v822, %v842
    %v864 = vadd.f32 %v862, %v863
    %v865 = vtanh.pop %v864
    %v866 = vmul.f32 %v861, %v865
    %v867 = vld [vmem:[#allocation2 + $0x60] sm:$0xff]
    %v868 = vld [vmem:[#allocation2 + $0x68] sm:$0xff]
    %v869 = vld [vmem:[#allocation2 + $0x70] sm:$0xff]
    %v870 = vld [vmem:[#allocation2 + $0x78] sm:$0xff]
    %v871 = vpack.c.bf16 %v866, %v866
    %872 = vmatpush.bf16.msra.mxu0 %v464
    %873 = vmatpush.bf16.msra.mxu0 %v460
    %874 = vmatpush.bf16.msra.mxu0 %v456
    %875 = vmatpush.bf16.msra.mxu0 %v452
    %876 = vmatpush.bf16.msra.mxu0 %v448
    %877 = vmatpush.bf16.msra.mxu0 %v444
    %878 = vmatpush.bf16.msra.mxu0 %v440
    %879 = vmatpush.bf16.msra.mxu0 %v436
    %880 = vmatmul.bf16.gmra.mxu0 %v871
    %v881 = vpop.f32.mrf.mxu0
    %v882 = vadd.f32 0.0, %v881
    %v883 = vpop.f32.mrf.mxu0
    %884 = vdwg.mxu0
    %885 = vmatpush.bf16.msra.mxu0 %v465
    %886 = vmatpush.bf16.msra.mxu0 %v461
    %887 = vmatpush.bf16.msra.mxu0 %v457
    %888 = vmatpush.bf16.msra.mxu0 %v453
    %889 = vmatpush.bf16.msra.mxu0 %v449
    %890 = vmatpush.bf16.msra.mxu0 %v445
    %891 = vmatpush.bf16.msra.mxu0 %v441
    %892 = vmatpush.bf16.msra.mxu0 %v437
    %893 = vmatmul.bf16.gmra.mxu0 %v871
    %v894 = vpop.f32.mrf.mxu0
    %v895 = vadd.f32 0.0, %v894
    %v896 = vpop.f32.mrf.mxu0
    %897 = vdwg.mxu0
    %898 = vmatpush.bf16.msra.mxu0 %v466
    %899 = vmatpush.bf16.msra.mxu0 %v462
    %900 = vmatpush.bf16.msra.mxu0 %v458
    %901 = vmatpush.bf16.msra.mxu0 %v454
    %902 = vmatpush.bf16.msra.mxu0 %v450
    %903 = vmatpush.bf16.msra.mxu0 %v446
    %904 = vmatpush.bf16.msra.mxu0 %v442
    %905 = vmatpush.bf16.msra.mxu0 %v438
    %906 = vmatmul.bf16.gmra.mxu0 %v871
    %v907 = vpop.f32.mrf.mxu0
    %v908 = vadd.f32 0.0, %v907
    %v909 = vpop.f32.mrf.mxu0
    %910 = vdwg.mxu0
    %911 = vmatpush.bf16.msra.mxu0 %v467
    %912 = vmatpush.bf16.msra.mxu0 %v463
    %913 = vmatpush.bf16.msra.mxu0 %v459
    %914 = vmatpush.bf16.msra.mxu0 %v455
    %915 = vmatpush.bf16.msra.mxu0 %v451
    %916 = vmatpush.bf16.msra.mxu0 %v447
    %917 = vmatpush.bf16.msra.mxu0 %v443
    %918 = vmatpush.bf16.msra.mxu0 %v439
    %919 = vmatmul.bf16.gmra.mxu0 %v871
    %v920 = vpop.f32.mrf.mxu0
    %v921 = vadd.f32 0.0, %v920
    %v922 = vpop.f32.mrf.mxu0
    %923 = vdwg.mxu0
    %v924 = vadd.f32 %v867, %v882
    %v925 = vadd.f32 %v868, %v895
    %v926 = vadd.f32 %v869, %v908
    %v927 = vadd.f32 %v870, %v921
    %v928 = vxor.u32 %v924, 2147483648
    %v929 = vmul.f32 %v928, 1.442695
    %v930 = vpow.pop %v929
    %v931 = vadd.f32 %v930, 1.0
    %v932 = vrcp.pop %v931
    %v933 = vmul.f32 %v931, %v932
    %v934 = vsub.f32 1.0, %v933
    %v935 = vmul.f32 %v932, %v934
    %v936 = vadd.f32 %v932, %v935
    %vm937 = vweird.f32 %v931
    %vm938 = vweird.f32 %v932
    %vm939 = vmor %vm937, %vm938
    %v940 = vsel %vm939, %v932, %v936
    %v941 = vand.u32 2147483647, %v931
    %vm942 = vcmp.eq.f32.partialorder %v941, 8.507059e+37
    %v943 = vand.u32 %v931, 2147483648
    %v944 = vor.u32 1.1754944e-38, %v943
    %v945 = vsel %vm942, %v944, %v940
    %v946 = vmul.f32 1.0, %v945
    %v947 = vxor.u32 %v925, 2147483648
    %v948 = vmul.f32 %v947, 1.442695
    %v949 = vpow.pop %v948
    %v950 = vadd.f32 %v949, 1.0
    %v951 = vrcp.pop %v950
    %v952 = vmul.f32 %v950, %v951
    %v953 = vsub.f32 1.0, %v952
    %v954 = vmul.f32 %v951, %v953
    %v955 = vadd.f32 %v951, %v954
    %vm956 = vweird.f32 %v950
    %vm957 = vweird.f32 %v951
    %vm958 = vmor %vm956, %vm957
    %v959 = vsel %vm958, %v951, %v955
    %v960 = vand.u32 2147483647, %v950
    %vm961 = vcmp.eq.f32.partialorder %v960, 8.507059e+37
    %v962 = vand.u32 %v950, 2147483648
    %v963 = vor.u32 1.1754944e-38, %v962
    %v964 = vsel %vm961, %v963, %v959
    %v965 = vmul.f32 1.0, %v964
    %v966 = vtanh.pop %v926
    %v967 = vxor.u32 %v927, 2147483648
    %v968 = vmul.f32 %v967, 1.442695
    %v969 = vpow.pop %v968
    %v970 = vadd.f32 %v969, 1.0
    %v971 = vrcp.pop %v970
    %v972 = vmul.f32 %v970, %v971
    %v973 = vsub.f32 1.0, %v972
    %v974 = vmul.f32 %v971, %v973
    %v975 = vadd.f32 %v971, %v974
    %vm976 = vweird.f32 %v970
    %vm977 = vweird.f32 %v971
    %vm978 = vmor %vm976, %vm977
    %v979 = vsel %vm978, %v971, %v975
    %v980 = vand.u32 2147483647, %v970
    %vm981 = vcmp.eq.f32.partialorder %v980, 8.507059e+37
    %v982 = vand.u32 %v970, 2147483648
    %v983 = vor.u32 1.1754944e-38, %v982
    %v984 = vsel %vm981, %v983, %v979
    %v985 = vmul.f32 1.0, %v984
    %v986 = vmul.f32 %v965, %v864
    %v987 = vmul.f32 %v946, %v966
    %v988 = vadd.f32 %v986, %v987
    %v989 = vtanh.pop %v988
    %v990 = vmul.f32 %v985, %v989
    %v991 = vld [vmem:[#allocation2 + $0x80] sm:$0xff]
    %v992 = vld [vmem:[#allocation2 + $0x88] sm:$0xff]
    %v993 = vld [vmem:[#allocation2 + $0x90] sm:$0xff]
    %v994 = vld [vmem:[#allocation2 + $0x98] sm:$0xff]
    %v995 = vpack.c.bf16 %v990, %v990
    %996 = vmatpush.bf16.msra.mxu0 %v464
    %997 = vmatpush.bf16.msra.mxu0 %v460
    %998 = vmatpush.bf16.msra.mxu0 %v456
    %999 = vmatpush.bf16.msra.mxu0 %v452
    %1000 = vmatpush.bf16.msra.mxu0 %v448
    %1001 = vmatpush.bf16.msra.mxu0 %v444
    %1002 = vmatpush.bf16.msra.mxu0 %v440
    %1003 = vmatpush.bf16.msra.mxu0 %v436
    %1004 = vmatmul.bf16.gmra.mxu0 %v995
    %v1005 = vpop.f32.mrf.mxu0
    %v1006 = vadd.f32 0.0, %v1005
    %v1007 = vpop.f32.mrf.mxu0
    %1008 = vdwg.mxu0
    %1009 = vmatpush.bf16.msra.mxu0 %v465
    %1010 = vmatpush.bf16.msra.mxu0 %v461
    %1011 = vmatpush.bf16.msra.mxu0 %v457
    %1012 = vmatpush.bf16.msra.mxu0 %v453
    %1013 = vmatpush.bf16.msra.mxu0 %v449
    %1014 = vmatpush.bf16.msra.mxu0 %v445
    %1015 = vmatpush.bf16.msra.mxu0 %v441
    %1016 = vmatpush.bf16.msra.mxu0 %v437
    %1017 = vmatmul.bf16.gmra.mxu0 %v995
    %v1018 = vpop.f32.mrf.mxu0
    %v1019 = vadd.f32 0.0, %v1018
    %v1020 = vpop.f32.mrf.mxu0
    %1021 = vdwg.mxu0
    %1022 = vmatpush.bf16.msra.mxu0 %v466
    %1023 = vmatpush.bf16.msra.mxu0 %v462
    %1024 = vmatpush.bf16.msra.mxu0 %v458
    %1025 = vmatpush.bf16.msra.mxu0 %v454
    %1026 = vmatpush.bf16.msra.mxu0 %v450
    %1027 = vmatpush.bf16.msra.mxu0 %v446
    %1028 = vmatpush.bf16.msra.mxu0 %v442
    %1029 = vmatpush.bf16.msra.mxu0 %v438
    %1030 = vmatmul.bf16.gmra.mxu0 %v995
    %v1031 = vpop.f32.mrf.mxu0
    %v1032 = vadd.f32 0.0, %v1031
    %v1033 = vpop.f32.mrf.mxu0
    %1034 = vdwg.mxu0
    %1035 = vmatpush.bf16.msra.mxu0 %v467
    %1036 = vmatpush.bf16.msra.mxu0 %v463
    %1037 = vmatpush.bf16.msra.mxu0 %v459
    %1038 = vmatpush.bf16.msra.mxu0 %v455
    %1039 = vmatpush.bf16.msra.mxu0 %v451
    %1040 = vmatpush.bf16.msra.mxu0 %v447
    %1041 = vmatpush.bf16.msra.mxu0 %v443
    %1042 = vmatpush.bf16.msra.mxu0 %v439
    %1043 = vmatmul.bf16.gmra.mxu0 %v995
    %v1044 = vpop.f32.mrf.mxu0
    %v1045 = vadd.f32 0.0, %v1044
    %v1046 = vpop.f32.mrf.mxu0
    %1047 = vdwg.mxu0
    %v1048 = vadd.f32 %v991, %v1006
    %v1049 = vadd.f32 %v992, %v1019
    %v1050 = vadd.f32 %v993, %v1032
    %v1051 = vadd.f32 %v994, %v1045
    %v1052 = vxor.u32 %v1048, 2147483648
    %v1053 = vmul.f32 %v1052, 1.442695
    %v1054 = vpow.pop %v1053
    %v1055 = vadd.f32 %v1054, 1.0
    %v1056 = vrcp.pop %v1055
    %v1057 = vmul.f32 %v1055, %v1056
    %v1058 = vsub.f32 1.0, %v1057
    %v1059 = vmul.f32 %v1056, %v1058
    %v1060 = vadd.f32 %v1056, %v1059
    %vm1061 = vweird.f32 %v1055
    %vm1062 = vweird.f32 %v1056
    %vm1063 = vmor %vm1061, %vm1062
    %v1064 = vsel %vm1063, %v1056, %v1060
    %v1065 = vand.u32 2147483647, %v1055
    %vm1066 = vcmp.eq.f32.partialorder %v1065, 8.507059e+37
    %v1067 = vand.u32 %v1055, 2147483648
    %v1068 = vor.u32 1.1754944e-38, %v1067
    %v1069 = vsel %vm1066, %v1068, %v1064
    %v1070 = vmul.f32 1.0, %v1069
    %v1071 = vxor.u32 %v1049, 2147483648
    %v1072 = vmul.f32 %v1071, 1.442695
    %v1073 = vpow.pop %v1072
    %v1074 = vadd.f32 %v1073, 1.0
    %v1075 = vrcp.pop %v1074
    %v1076 = vmul.f32 %v1074, %v1075
    %v1077 = vsub.f32 1.0, %v1076
    %v1078 = vmul.f32 %v1075, %v1077
    %v1079 = vadd.f32 %v1075, %v1078
    %vm1080 = vweird.f32 %v1074
    %vm1081 = vweird.f32 %v1075
    %vm1082 = vmor %vm1080, %vm1081
    %v1083 = vsel %vm1082, %v1075, %v1079
    %v1084 = vand.u32 2147483647, %v1074
    %vm1085 = vcmp.eq.f32.partialorder %v1084, 8.507059e+37
    %v1086 = vand.u32 %v1074, 2147483648
    %v1087 = vor.u32 1.1754944e-38, %v1086
    %v1088 = vsel %vm1085, %v1087, %v1083
    %v1089 = vmul.f32 1.0, %v1088
    %v1090 = vtanh.pop %v1050
    %v1091 = vxor.u32 %v1051, 2147483648
    %v1092 = vmul.f32 %v1091, 1.442695
    %v1093 = vpow.pop %v1092
    %v1094 = vadd.f32 %v1093, 1.0
    %v1095 = vrcp.pop %v1094
    %v1096 = vmul.f32 %v1094, %v1095
    %v1097 = vsub.f32 1.0, %v1096
    %v1098 = vmul.f32 %v1095, %v1097
    %v1099 = vadd.f32 %v1095, %v1098
    %vm1100 = vweird.f32 %v1094
    %vm1101 = vweird.f32 %v1095
    %vm1102 = vmor %vm1100, %vm1101
    %v1103 = vsel %vm1102, %v1095, %v1099
    %v1104 = vand.u32 2147483647, %v1094
    %vm1105 = vcmp.eq.f32.partialorder %v1104, 8.507059e+37
    %v1106 = vand.u32 %v1094, 2147483648
    %v1107 = vor.u32 1.1754944e-38, %v1106
    %v1108 = vsel %vm1105, %v1107, %v1103
    %v1109 = vmul.f32 1.0, %v1108
    %v1110 = vmul.f32 %v1089, %v988
    %v1111 = vmul.f32 %v1070, %v1090
    %v1112 = vadd.f32 %v1110, %v1111
    %v1113 = vtanh.pop %v1112
    %v1114 = vmul.f32 %v1109, %v1113
    %v1115 = vld [vmem:[#allocation2 + $0xa0] sm:$0xff]
    %v1116 = vld [vmem:[#allocation2 + $0xa8] sm:$0xff]
    %v1117 = vld [vmem:[#allocation2 + $0xb0] sm:$0xff]
    %v1118 = vld [vmem:[#allocation2 + $0xb8] sm:$0xff]
    %v1119 = vpack.c.bf16 %v1114, %v1114
    %1120 = vmatpush.bf16.msra.mxu0 %v464
    %1121 = vmatpush.bf16.msra.mxu0 %v460
    %1122 = vmatpush.bf16.msra.mxu0 %v456
    %1123 = vmatpush.bf16.msra.mxu0 %v452
    %1124 = vmatpush.bf16.msra.mxu0 %v448
    %1125 = vmatpush.bf16.msra.mxu0 %v444
    %1126 = vmatpush.bf16.msra.mxu0 %v440
    %1127 = vmatpush.bf16.msra.mxu0 %v436
    %1128 = vmatmul.bf16.gmra.mxu0 %v1119
    %v1129 = vpop.f32.mrf.mxu0
    %v1130 = vadd.f32 0.0, %v1129
    %v1131 = vpop.f32.mrf.mxu0
    %1132 = vdwg.mxu0
    %1133 = vmatpush.bf16.msra.mxu0 %v465
    %1134 = vmatpush.bf16.msra.mxu0 %v461
    %1135 = vmatpush.bf16.msra.mxu0 %v457
    %1136 = vmatpush.bf16.msra.mxu0 %v453
    %1137 = vmatpush.bf16.msra.mxu0 %v449
    %1138 = vmatpush.bf16.msra.mxu0 %v445
    %1139 = vmatpush.bf16.msra.mxu0 %v441
    %1140 = vmatpush.bf16.msra.mxu0 %v437
    %1141 = vmatmul.bf16.gmra.mxu0 %v1119
    %v1142 = vpop.f32.mrf.mxu0
    %v1143 = vadd.f32 0.0, %v1142
    %v1144 = vpop.f32.mrf.mxu0
    %1145 = vdwg.mxu0
    %1146 = vmatpush.bf16.msra.mxu0 %v466
    %1147 = vmatpush.bf16.msra.mxu0 %v462
    %1148 = vmatpush.bf16.msra.mxu0 %v458
    %1149 = vmatpush.bf16.msra.mxu0 %v454
    %1150 = vmatpush.bf16.msra.mxu0 %v450
    %1151 = vmatpush.bf16.msra.mxu0 %v446
    %1152 = vmatpush.bf16.msra.mxu0 %v442
    %1153 = vmatpush.bf16.msra.mxu0 %v438
    %1154 = vmatmul.bf16.gmra.mxu0 %v1119
    %v1155 = vpop.f32.mrf.mxu0
    %v1156 = vadd.f32 0.0, %v1155
    %v1157 = vpop.f32.mrf.mxu0
    %1158 = vdwg.mxu0
    %1159 = vmatpush.bf16.msra.mxu0 %v467
    %1160 = vmatpush.bf16.msra.mxu0 %v463
    %1161 = vmatpush.bf16.msra.mxu0 %v459
    %1162 = vmatpush.bf16.msra.mxu0 %v455
    %1163 = vmatpush.bf16.msra.mxu0 %v451
    %1164 = vmatpush.bf16.msra.mxu0 %v447
    %1165 = vmatpush.bf16.msra.mxu0 %v443
    %1166 = vmatpush.bf16.msra.mxu0 %v439
    %1167 = vmatmul.bf16.gmra.mxu0 %v1119
    %v1168 = vpop.f32.mrf.mxu0
    %v1169 = vadd.f32 0.0, %v1168
    %v1170 = vpop.f32.mrf.mxu0
    %1171 = vdwg.mxu0
    %v1172 = vadd.f32 %v1115, %v1130
    %v1173 = vadd.f32 %v1116, %v1143
    %v1174 = vadd.f32 %v1117, %v1156
    %v1175 = vadd.f32 %v1118, %v1169
    %v1176 = vxor.u32 %v1172, 2147483648
    %v1177 = vmul.f32 %v1176, 1.442695
    %v1178 = vpow.pop %v1177
    %v1179 = vadd.f32 %v1178, 1.0
    %v1180 = vrcp.pop %v1179
    %v1181 = vmul.f32 %v1179, %v1180
    %v1182 = vsub.f32 1.0, %v1181
    %v1183 = vmul.f32 %v1180, %v1182
    %v1184 = vadd.f32 %v1180, %v1183
    %vm1185 = vweird.f32 %v1179
    %vm1186 = vweird.f32 %v1180
    %vm1187 = vmor %vm1185, %vm1186
    %v1188 = vsel %vm1187, %v1180, %v1184
    %v1189 = vand.u32 2147483647, %v1179
    %vm1190 = vcmp.eq.f32.partialorder %v1189, 8.507059e+37
    %v1191 = vand.u32 %v1179, 2147483648
    %v1192 = vor.u32 1.1754944e-38, %v1191
    %v1193 = vsel %vm1190, %v1192, %v1188
    %v1194 = vmul.f32 1.0, %v1193
    %v1195 = vxor.u32 %v1173, 2147483648
    %v1196 = vmul.f32 %v1195, 1.442695
    %v1197 = vpow.pop %v1196
    %v1198 = vadd.f32 %v1197, 1.0
    %v1199 = vrcp.pop %v1198
    %v1200 = vmul.f32 %v1198, %v1199
    %v1201 = vsub.f32 1.0, %v1200
    %v1202 = vmul.f32 %v1199, %v1201
    %v1203 = vadd.f32 %v1199, %v1202
    %vm1204 = vweird.f32 %v1198
    %vm1205 = vweird.f32 %v1199
    %vm1206 = vmor %vm1204, %vm1205
    %v1207 = vsel %vm1206, %v1199, %v1203
    %v1208 = vand.u32 2147483647, %v1198
    %vm1209 = vcmp.eq.f32.partialorder %v1208, 8.507059e+37
    %v1210 = vand.u32 %v1198, 2147483648
    %v1211 = vor.u32 1.1754944e-38, %v1210
    %v1212 = vsel %vm1209, %v1211, %v1207
    %v1213 = vmul.f32 1.0, %v1212
    %v1214 = vtanh.pop %v1174
    %v1215 = vxor.u32 %v1175, 2147483648
    %v1216 = vmul.f32 %v1215, 1.442695
    %v1217 = vpow.pop %v1216
    %v1218 = vadd.f32 %v1217, 1.0
    %v1219 = vrcp.pop %v1218
    %v1220 = vmul.f32 %v1218, %v1219
    %v1221 = vsub.f32 1.0, %v1220
    %v1222 = vmul.f32 %v1219, %v1221
    %v1223 = vadd.f32 %v1219, %v1222
    %vm1224 = vweird.f32 %v1218
    %vm1225 = vweird.f32 %v1219
    %vm1226 = vmor %vm1224, %vm1225
    %v1227 = vsel %vm1226, %v1219, %v1223
    %v1228 = vand.u32 2147483647, %v1218
    %vm1229 = vcmp.eq.f32.partialorder %v1228, 8.507059e+37
    %v1230 = vand.u32 %v1218, 2147483648
    %v1231 = vor.u32 1.1754944e-38, %v1230
    %v1232 = vsel %vm1229, %v1231, %v1227
    %v1233 = vmul.f32 1.0, %v1232
    %v1234 = vmul.f32 %v1213, %v1112
    %v1235 = vmul.f32 %v1194, %v1214
    %v1236 = vadd.f32 %v1234, %v1235
    %v1237 = vtanh.pop %v1236
    %v1238 = vmul.f32 %v1233, %v1237
    %v1239 = vld [vmem:[#allocation2 + $0xc0] sm:$0xff]
    %v1240 = vld [vmem:[#allocation2 + $0xc8] sm:$0xff]
    %v1241 = vld [vmem:[#allocation2 + $0xd0] sm:$0xff]
    %v1242 = vld [vmem:[#allocation2 + $0xd8] sm:$0xff]
    %v1243 = vpack.c.bf16 %v1238, %v1238
    %1244 = vmatpush.bf16.msra.mxu0 %v464
    %1245 = vmatpush.bf16.msra.mxu0 %v460
    %1246 = vmatpush.bf16.msra.mxu0 %v456
    %1247 = vmatpush.bf16.msra.mxu0 %v452
    %1248 = vmatpush.bf16.msra.mxu0 %v448
    %1249 = vmatpush.bf16.msra.mxu0 %v444
    %1250 = vmatpush.bf16.msra.mxu0 %v440
    %1251 = vmatpush.bf16.msra.mxu0 %v436
    %1252 = vmatmul.bf16.gmra.mxu0 %v1243
    %v1253 = vpop.f32.mrf.mxu0
    %v1254 = vadd.f32 0.0, %v1253
    %v1255 = vpop.f32.mrf.mxu0
    %1256 = vdwg.mxu0
    %1257 = vmatpush.bf16.msra.mxu0 %v465
    %1258 = vmatpush.bf16.msra.mxu0 %v461
    %1259 = vmatpush.bf16.msra.mxu0 %v457
    %1260 = vmatpush.bf16.msra.mxu0 %v453
    %1261 = vmatpush.bf16.msra.mxu0 %v449
    %1262 = vmatpush.bf16.msra.mxu0 %v445
    %1263 = vmatpush.bf16.msra.mxu0 %v441
    %1264 = vmatpush.bf16.msra.mxu0 %v437
    %1265 = vmatmul.bf16.gmra.mxu0 %v1243
    %v1266 = vpop.f32.mrf.mxu0
    %v1267 = vadd.f32 0.0, %v1266
    %v1268 = vpop.f32.mrf.mxu0
    %1269 = vdwg.mxu0
    %1270 = vmatpush.bf16.msra.mxu0 %v466
    %1271 = vmatpush.bf16.msra.mxu0 %v462
    %1272 = vmatpush.bf16.msra.mxu0 %v458
    %1273 = vmatpush.bf16.msra.mxu0 %v454
    %1274 = vmatpush.bf16.msra.mxu0 %v450
    %1275 = vmatpush.bf16.msra.mxu0 %v446
    %1276 = vmatpush.bf16.msra.mxu0 %v442
    %1277 = vmatpush.bf16.msra.mxu0 %v438
    %1278 = vmatmul.bf16.gmra.mxu0 %v1243
    %v1279 = vpop.f32.mrf.mxu0
    %v1280 = vadd.f32 0.0, %v1279
    %v1281 = vpop.f32.mrf.mxu0
    %1282 = vdwg.mxu0
    %1283 = vmatpush.bf16.msra.mxu0 %v467
    %1284 = vmatpush.bf16.msra.mxu0 %v463
    %1285 = vmatpush.bf16.msra.mxu0 %v459
    %1286 = vmatpush.bf16.msra.mxu0 %v455
    %1287 = vmatpush.bf16.msra.mxu0 %v451
    %1288 = vmatpush.bf16.msra.mxu0 %v447
    %1289 = vmatpush.bf16.msra.mxu0 %v443
    %1290 = vmatpush.bf16.msra.mxu0 %v439
    %1291 = vmatmul.bf16.gmra.mxu0 %v1243
    %v1292 = vpop.f32.mrf.mxu0
    %v1293 = vadd.f32 0.0, %v1292
    %v1294 = vpop.f32.mrf.mxu0
    %1295 = vdwg.mxu0
    %v1296 = vadd.f32 %v1239, %v1254
    %v1297 = vadd.f32 %v1240, %v1267
    %v1298 = vadd.f32 %v1241, %v1280
    %v1299 = vadd.f32 %v1242, %v1293
    %v1300 = vxor.u32 %v1296, 2147483648
    %v1301 = vmul.f32 %v1300, 1.442695
    %v1302 = vpow.pop %v1301
    %v1303 = vadd.f32 %v1302, 1.0
    %v1304 = vrcp.pop %v1303
    %v1305 = vmul.f32 %v1303, %v1304
    %v1306 = vsub.f32 1.0, %v1305
    %v1307 = vmul.f32 %v1304, %v1306
    %v1308 = vadd.f32 %v1304, %v1307
    %vm1309 = vweird.f32 %v1303
    %vm1310 = vweird.f32 %v1304
    %vm1311 = vmor %vm1309, %vm1310
    %v1312 = vsel %vm1311, %v1304, %v1308
    %v1313 = vand.u32 2147483647, %v1303
    %vm1314 = vcmp.eq.f32.partialorder %v1313, 8.507059e+37
    %v1315 = vand.u32 %v1303, 2147483648
    %v1316 = vor.u32 1.1754944e-38, %v1315
    %v1317 = vsel %vm1314, %v1316, %v1312
    %v1318 = vmul.f32 1.0, %v1317
    %v1319 = vxor.u32 %v1297, 2147483648
    %v1320 = vmul.f32 %v1319, 1.442695
    %v1321 = vpow.pop %v1320
    %v1322 = vadd.f32 %v1321, 1.0
    %v1323 = vrcp.pop %v1322
    %v1324 = vmul.f32 %v1322, %v1323
    %v1325 = vsub.f32 1.0, %v1324
    %v1326 = vmul.f32 %v1323, %v1325
    %v1327 = vadd.f32 %v1323, %v1326
    %vm1328 = vweird.f32 %v1322
    %vm1329 = vweird.f32 %v1323
    %vm1330 = vmor %vm1328, %vm1329
    %v1331 = vsel %vm1330, %v1323, %v1327
    %v1332 = vand.u32 2147483647, %v1322
    %vm1333 = vcmp.eq.f32.partialorder %v1332, 8.507059e+37
    %v1334 = vand.u32 %v1322, 2147483648
    %v1335 = vor.u32 1.1754944e-38, %v1334
    %v1336 = vsel %vm1333, %v1335, %v1331
    %v1337 = vmul.f32 1.0, %v1336
    %v1338 = vtanh.pop %v1298
    %v1339 = vxor.u32 %v1299, 2147483648
    %v1340 = vmul.f32 %v1339, 1.442695
    %v1341 = vpow.pop %v1340
    %v1342 = vadd.f32 %v1341, 1.0
    %v1343 = vrcp.pop %v1342
    %v1344 = vmul.f32 %v1342, %v1343
    %v1345 = vsub.f32 1.0, %v1344
    %v1346 = vmul.f32 %v1343, %v1345
    %v1347 = vadd.f32 %v1343, %v1346
    %vm1348 = vweird.f32 %v1342
    %vm1349 = vweird.f32 %v1343
    %vm1350 = vmor %vm1348, %vm1349
    %v1351 = vsel %vm1350, %v1343, %v1347
    %v1352 = vand.u32 2147483647, %v1342
    %vm1353 = vcmp.eq.f32.partialorder %v1352, 8.507059e+37
    %v1354 = vand.u32 %v1342, 2147483648
    %v1355 = vor.u32 1.1754944e-38, %v1354
    %v1356 = vsel %vm1353, %v1355, %v1351
    %v1357 = vmul.f32 1.0, %v1356
    %v1358 = vmul.f32 %v1337, %v1236
    %v1359 = vmul.f32 %v1318, %v1338
    %v1360 = vadd.f32 %v1358, %v1359
    %v1361 = vtanh.pop %v1360
    %v1362 = vmul.f32 %v1357, %v1361
    %v1363 = vld [vmem:[#allocation2 + $0xe0] sm:$0xff]
    %v1364 = vld [vmem:[#allocation2 + $0xe8] sm:$0xff]
    %v1365 = vld [vmem:[#allocation2 + $0xf0] sm:$0xff]
    %v1366 = vld [vmem:[#allocation2 + $0xf8] sm:$0xff]
    %v1367 = vpack.c.bf16 %v1362, %v1362
    %1368 = vmatpush.bf16.msra.mxu0 %v464
    %1369 = vmatpush.bf16.msra.mxu0 %v460
    %1370 = vmatpush.bf16.msra.mxu0 %v456
    %1371 = vmatpush.bf16.msra.mxu0 %v452
    %1372 = vmatpush.bf16.msra.mxu0 %v448
    %1373 = vmatpush.bf16.msra.mxu0 %v444
    %1374 = vmatpush.bf16.msra.mxu0 %v440
    %1375 = vmatpush.bf16.msra.mxu0 %v436
    %1376 = vmatmul.bf16.gmra.mxu0 %v1367
    %v1377 = vpop.f32.mrf.mxu0
    %v1378 = vadd.f32 0.0, %v1377
    %v1379 = vpop.f32.mrf.mxu0
    %1380 = vdwg.mxu0
    %1381 = vmatpush.bf16.msra.mxu0 %v465
    %1382 = vmatpush.bf16.msra.mxu0 %v461
    %1383 = vmatpush.bf16.msra.mxu0 %v457
    %1384 = vmatpush.bf16.msra.mxu0 %v453
    %1385 = vmatpush.bf16.msra.mxu0 %v449
    %1386 = vmatpush.bf16.msra.mxu0 %v445
    %1387 = vmatpush.bf16.msra.mxu0 %v441
    %1388 = vmatpush.bf16.msra.mxu0 %v437
    %1389 = vmatmul.bf16.gmra.mxu0 %v1367
    %v1390 = vpop.f32.mrf.mxu0
    %v1391 = vadd.f32 0.0, %v1390
    %v1392 = vpop.f32.mrf.mxu0
    %1393 = vdwg.mxu0
    %1394 = vmatpush.bf16.msra.mxu0 %v466
    %1395 = vmatpush.bf16.msra.mxu0 %v462
    %1396 = vmatpush.bf16.msra.mxu0 %v458
    %1397 = vmatpush.bf16.msra.mxu0 %v454
    %1398 = vmatpush.bf16.msra.mxu0 %v450
    %1399 = vmatpush.bf16.msra.mxu0 %v446
    %1400 = vmatpush.bf16.msra.mxu0 %v442
    %1401 = vmatpush.bf16.msra.mxu0 %v438
    %1402 = vmatmul.bf16.gmra.mxu0 %v1367
    %v1403 = vpop.f32.mrf.mxu0
    %v1404 = vadd.f32 0.0, %v1403
    %v1405 = vpop.f32.mrf.mxu0
    %1406 = vdwg.mxu0
    %1407 = vmatpush.bf16.msra.mxu0 %v467
    %1408 = vmatpush.bf16.msra.mxu0 %v463
    %1409 = vmatpush.bf16.msra.mxu0 %v459
    %1410 = vmatpush.bf16.msra.mxu0 %v455
    %1411 = vmatpush.bf16.msra.mxu0 %v451
    %1412 = vmatpush.bf16.msra.mxu0 %v447
    %1413 = vmatpush.bf16.msra.mxu0 %v443
    %1414 = vmatpush.bf16.msra.mxu0 %v439
    %1415 = vmatmul.bf16.gmra.mxu0 %v1367
    %v1416 = vpop.f32.mrf.mxu0
    %v1417 = vadd.f32 0.0, %v1416
    %v1418 = vpop.f32.mrf.mxu0
    %1419 = vdwg.mxu0
    %v1420 = vadd.f32 %v1363, %v1378
    %v1421 = vadd.f32 %v1364, %v1391
    %v1422 = vadd.f32 %v1365, %v1404
    %v1423 = vadd.f32 %v1366, %v1417
    %v1424 = vxor.u32 %v1420, 2147483648
    %v1425 = vmul.f32 %v1424, 1.442695
    %v1426 = vpow.pop %v1425
    %v1427 = vadd.f32 %v1426, 1.0
    %v1428 = vrcp.pop %v1427
    %v1429 = vmul.f32 %v1427, %v1428
    %v1430 = vsub.f32 1.0, %v1429
    %v1431 = vmul.f32 %v1428, %v1430
    %v1432 = vadd.f32 %v1428, %v1431
    %vm1433 = vweird.f32 %v1427
    %vm1434 = vweird.f32 %v1428
    %vm1435 = vmor %vm1433, %vm1434
    %v1436 = vsel %vm1435, %v1428, %v1432
    %v1437 = vand.u32 2147483647, %v1427
    %vm1438 = vcmp.eq.f32.partialorder %v1437, 8.507059e+37
    %v1439 = vand.u32 %v1427, 2147483648
    %v1440 = vor.u32 1.1754944e-38, %v1439
    %v1441 = vsel %vm1438, %v1440, %v1436
    %v1442 = vmul.f32 1.0, %v1441
    %v1443 = vxor.u32 %v1421, 2147483648
    %v1444 = vmul.f32 %v1443, 1.442695
    %v1445 = vpow.pop %v1444
    %v1446 = vadd.f32 %v1445, 1.0
    %v1447 = vrcp.pop %v1446
    %v1448 = vmul.f32 %v1446, %v1447
    %v1449 = vsub.f32 1.0, %v1448
    %v1450 = vmul.f32 %v1447, %v1449
    %v1451 = vadd.f32 %v1447, %v1450
    %vm1452 = vweird.f32 %v1446
    %vm1453 = vweird.f32 %v1447
    %vm1454 = vmor %vm1452, %vm1453
    %v1455 = vsel %vm1454, %v1447, %v1451
    %v1456 = vand.u32 2147483647, %v1446
    %vm1457 = vcmp.eq.f32.partialorder %v1456, 8.507059e+37
    %v1458 = vand.u32 %v1446, 2147483648
    %v1459 = vor.u32 1.1754944e-38, %v1458
    %v1460 = vsel %vm1457, %v1459, %v1455
    %v1461 = vmul.f32 1.0, %v1460
    %v1462 = vtanh.pop %v1422
    %v1463 = vxor.u32 %v1423, 2147483648
    %v1464 = vmul.f32 %v1463, 1.442695
    %v1465 = vpow.pop %v1464
    %v1466 = vadd.f32 %v1465, 1.0
    %v1467 = vrcp.pop %v1466
    %v1468 = vmul.f32 %v1466, %v1467
    %v1469 = vsub.f32 1.0, %v1468
    %v1470 = vmul.f32 %v1467, %v1469
    %v1471 = vadd.f32 %v1467, %v1470
    %vm1472 = vweird.f32 %v1466
    %vm1473 = vweird.f32 %v1467
    %vm1474 = vmor %vm1472, %vm1473
    %v1475 = vsel %vm1474, %v1467, %v1471
    %v1476 = vand.u32 2147483647, %v1466
    %vm1477 = vcmp.eq.f32.partialorder %v1476, 8.507059e+37
    %v1478 = vand.u32 %v1466, 2147483648
    %v1479 = vor.u32 1.1754944e-38, %v1478
    %v1480 = vsel %vm1477, %v1479, %v1475
    %v1481 = vmul.f32 1.0, %v1480
    %v1482 = vmul.f32 %v1461, %v1360
    %v1483 = vmul.f32 %v1442, %v1462
    %v1484 = vadd.f32 %v1482, %v1483
    %v1485 = vtanh.pop %v1484
    %v1486 = vmul.f32 %v1481, %v1485
    %v1487 = vpack.c.bf16 %v1486, %v1486
    %v1488 = vld [vmem:[%s4] sm:$0xf]
    %v1489 = vld [vmem:[%s4 + $0x4] sm:$0xf]
    %v1490 = vld [vmem:[%s4 + $0x8] sm:$0xf]
    %v1491 = vld [vmem:[%s4 + $0xc] sm:$0xf]
    %v1492 = vld [vmem:[%s4 + $0x10] sm:$0xf]
    %v1493 = vld [vmem:[%s4 + $0x14] sm:$0xf]
    %v1494 = vld [vmem:[%s4 + $0x18] sm:$0xf]
    %v1495 = vld [vmem:[%s4 + $0x1c] sm:$0xf]
    %v1496 = vld [vmem:[%s4 + $0x20] sm:$0xf]
    %v1497 = vld [vmem:[%s4 + $0x24] sm:$0xf]
    %v1498 = vld [vmem:[%s4 + $0x28] sm:$0xf]
    %v1499 = vld [vmem:[%s4 + $0x2c] sm:$0xf]
    %v1500 = vld [vmem:[%s4 + $0x30] sm:$0xf]
    %v1501 = vld [vmem:[%s4 + $0x34] sm:$0xf]
    %v1502 = vld [vmem:[%s4 + $0x38] sm:$0xf]
    %v1503 = vld [vmem:[%s4 + $0x3c] sm:$0xf]
    %v1504 = vld [vmem:[%s5] sm:$0x1]
    %v1506 = vperm.slane %v1504, 0
    %v1524 = vunpack.c.l.b16 %v1488
    %v1525 = vunpack.c.l.b16 %v1489
    %v1526 = vunpack.c.l.b16 %v1490
    %v1527 = vunpack.c.l.b16 %v1491
    %v1528 = vunpack.c.l.b16 %v1492
    %v1529 = vunpack.c.l.b16 %v1493
    %v1530 = vunpack.c.l.b16 %v1494
    %v1531 = vunpack.c.l.b16 %v1495
    %v1532 = vunpack.c.l.b16 %v1496
    %v1533 = vunpack.c.l.b16 %v1497
    %v1534 = vunpack.c.l.b16 %v1498
    %v1535 = vunpack.c.l.b16 %v1499
    %v1536 = vunpack.c.l.b16 %v1500
    %v1537 = vunpack.c.l.b16 %v1501
    %v1538 = vunpack.c.l.b16 %v1502
    %v1539 = vunpack.c.l.b16 %v1503
    %v1540 = vpack.c.b16 %v1525, %v1524
    %v1541 = vpack.c.b16 %v1527, %v1526
    %v1542 = vpack.c.b16 %v1529, %v1528
    %v1543 = vpack.c.b16 %v1531, %v1530
    %v1544 = vpack.c.b16 %v1533, %v1532
    %v1545 = vpack.c.b16 %v1535, %v1534
    %v1546 = vpack.c.b16 %v1537, %v1536
    %v1547 = vpack.c.b16 %v1539, %v1538
    %1556 = vmatpush.bf16.msra.mxu0 %v1547
    %1557 = vmatpush.bf16.msra.mxu0 %v1546
    %1558 = vmatpush.bf16.msra.mxu0 %v1545
    %1559 = vmatpush.bf16.msra.mxu0 %v1544
    %1560 = vmatpush.bf16.msra.mxu0 %v1543
    %1561 = vmatpush.bf16.msra.mxu0 %v1542
    %1562 = vmatpush.bf16.msra.mxu0 %v1541
    %1563 = vmatpush.bf16.msra.mxu0 %v1540
    %1564 = vmatmul.bf16.gmra.mxu0 %v1487
    %v1565 = vpop.f32.mrf.mxu0
    %v1566 = vadd.f32 %v1506, %v1565
    %v1567 = vpop.f32.mrf.mxu0
    %1568 = vdwg.mxu0
    %1569 = vmax.xlane.f32.xlu0 %v1566
    %v1570 = vpop.xlane.xlu0 %1569
    %v1571 = vsub.f32 %v1566, %v1570
    %v1572 = vmul.f32 %v1571, 1.442695
    %v1573 = vpow.pop %v1572
    %1574 = vadd.xlane.f32.xlu0 %v1573
    %v1575 = vpop.xlane.xlu0 %1574
    %v1576 = vrcp.pop %v1575
    %v1577 = vmul.f32 %v1575, %v1576
    %v1578 = vsub.f32 1.0, %v1577
    %v1579 = vmul.f32 %v1576, %v1578
    %v1580 = vadd.f32 %v1576, %v1579
    %vm1581 = vweird.f32 %v1575
    %vm1582 = vweird.f32 %v1576
    %vm1583 = vmor %vm1581, %vm1582
    %v1584 = vsel %vm1583, %v1576, %v1580
    %v1585 = vand.u32 2147483647, %v1575
    %vm1586 = vcmp.eq.f32.partialorder %v1585, 8.507059e+37
    %v1587 = vand.u32 %v1575, 2147483648
    %v1588 = vor.u32 1.1754944e-38, %v1587
    %v1589 = vsel %vm1586, %v1588, %v1584
    %v1590 = vmul.f32 %v1573, %v1589
    %1591 = vst [vmem:[%s6] sm:$0xff] %v1590
    // Predicated region
    $region34: #{lstm_classifier.1} parent=1 // pred_check
      _
    $region35: #{lstm_classifier.1} parent=1 // pred_check_branch
      %1593 = sbr.rel (0) target = $region37
    $region36: #{lstm_classifier.1} parent=1 // pred_region
      _
    $region37: #{lstm_classifier.1} parent=1 // pred_fallthru
      _
    // Predicated region
    $region38: #{lstm_classifier.1} parent=1 // pred_check
      _
    $region39: #{lstm_classifier.1} parent=1 // pred_check_branch
      %1595 = sbr.rel (0) target = $region41
    $region40: #{lstm_classifier.1} parent=1 // pred_region
      _
    $region41: #{lstm_classifier.1} parent=1 // pred_fallthru
      _
    %1596 = vsyncpa [#allocation4], 1
    %1597 = vsyncpa [#allocation6], 1

</llo_original>
